<compile_context>
chip_gen: v7x
topology: tpu7x:2x2x1
jax: 0.10.0
libtpu: 0.0.40
codegen_flags: <defaults>
</compile_context>

<pallas_src>
import functools

import jax
import jax.numpy as jnp
from jax.experimental import pallas as pl
from jax.experimental.pallas import tpu as pltpu

NEG_SLOPE = 0.01  # nn.LeakyReLU default
LANE = 128
BF16 = jnp.bfloat16


def _leaky(x):
    return jnp.where(x > 0, x, NEG_SLOPE * x)


def _relu(x):
    return jnp.maximum(x, 0.0)


# ----------------------------------------------------------------------------
# Fused forward kernel: graph_pre + layers + FA(+HNE) + fc_pred, single call.
# ----------------------------------------------------------------------------
def _deepatc_fused_kernel(
        N, num_layer,
        x1_ref, abd_ref, x2_ref, seg_ref,
        gpw_ref, gpb_ref,
        lw_ref, lb_ref,
        wfa_ref, bfa_ref,
        wh1_hbm, bh1_ref, wh2_hbm, bh2_ref,
        a2w1_ref, a2b1_ref, a2w2_ref, a2b2_ref,
        wp_ref, bp_ref,
        o_ref,
        wh1_vmem, wh2_vmem, dma_sem):
    # Kick off the two big HNE weight copies; they overlap the graph-conv stack.
    cp1 = pltpu.make_async_copy(wh1_hbm, wh1_vmem, dma_sem.at[0])
    cp2 = pltpu.make_async_copy(wh2_hbm, wh2_vmem, dma_sem.at[1])
    cp1.start()
    cp2.start()

    H = gpw_ref.shape[1] // 2

    x_in = x1_ref[...]      # (B*N, Din)  bf16 -- all graphs packed row-wise
    A = abd_ref[...]        # (B*N, B*N)  bf16 -- block-diagonal adjacency

    # --- graph_pre: fused [fc_hidden | fc_1] projection, then A @ xw, 'sc' skip ---
    xcat = jnp.dot(x_in, gpw_ref[...],
                   preferred_element_type=jnp.float32) + gpb_ref[...]     # (B*N, 2H) f32
    xw = xcat[:, :H]
    xs = xcat[:, H:]
    xn = jnp.dot(A, xw.astype(BF16), preferred_element_type=jnp.float32)  # per-graph bmm
    x = _leaky(xs + xn)                                                   # act(fc_1(x)+x_new)

    # --- stacked Graph_Conv(H, H), 'sc' skip with equal dims (no projection) ---
    for l in range(num_layer):                                            # static unroll
        xw = jnp.dot(x.astype(BF16), lw_ref[l],
                     preferred_element_type=jnp.float32) + lb_ref[l]
        xn = jnp.dot(A, xw.astype(BF16), preferred_element_type=jnp.float32)
        x = _leaky(x + xn)                                                # act(x + x_new)

    # --- FA ---
    # Per-graph node sum via precomputed segment matrix (MXU, no sublane reduce).
    x1sum = jnp.dot(seg_ref[...], x.astype(BF16),
                    preferred_element_type=jnp.float32)                   # (B, H)
    # sum-then-matmul:  sum_n(x_n @ Wfa + b) == (sum_n x_n) @ Wfa + N*b
    x1p = jnp.dot(x1sum.astype(BF16), wfa_ref[...],
                  preferred_element_type=jnp.float32) + N * bfa_ref[...]  # (B, H2)

    # HNE(x2): fc -> LeakyReLU -> (dropout=id) -> fc2 -> LeakyReLU -> (dropout=id)
    cp1.wait()
    cp2.wait()
    h = _leaky(jnp.dot(x2_ref[...], wh1_vmem[...],
                       preferred_element_type=jnp.float32) + bh1_ref[...])
    x2h = _leaky(jnp.dot(h.astype(BF16), wh2_vmem[...],
                         preferred_element_type=jnp.float32) + bh2_ref[...])

    # attention1 = Softmax(dim=1) over a (B, 1) logit is identically 1.0 -> identity.
    # (Exactly reproduces the PyTorch nn.Softmax() behaviour; removed at zero cost.)

    # attention2 on the concatenated features: single (512, 256) matmul.
    cat = jnp.concatenate([x1p, x2h], axis=1).astype(BF16)                # (B, 2*H2)
    h2 = _relu(jnp.dot(cat, a2w1_ref[...],
                       preferred_element_type=jnp.float32) + a2b1_ref[...])
    c = jax.nn.softmax(
        jnp.dot(h2, a2w2_ref[...], preferred_element_type=jnp.float32) + a2b2_ref[...],
        axis=1)                                                           # (B, 2) f32

    xf = x1p + x2h + x1p * c[:, 0:1] + x2h * c[:, 1:2]                    # FA output (B, 256)

    # DeepATC.fc_pred into a lane-dense (zero-padded to 128) output slab.
    o_ref[...] = jnp.dot(xf.astype(BF16), wp_ref[...],
                         preferred_element_type=jnp.float32) + bp_ref[...]


# ----------------------------------------------------------------------------
# Wrapper: layout plumbing (flatten batch, block-diag A, bf16 cast, padded head).
# ----------------------------------------------------------------------------
def deepatc_forward(x1, A, x2, params, num_layer):
    B, N, Din = x1.shape
    H = params["gp_w"].shape[1]
    H2, num_class = params["w_pred"].shape
    E, Hh = params["w_h1"].shape

    # Pack the batch of graphs into one row slab; block-diagonal adjacency lets a single
    # matmul replace the per-graph bmm.  Fine at this toy B; for large B switch to a
    # per-graph "parallel" grid instead (also uses both v7x TensorCores).
    x1_flat = x1.reshape(B * N, Din).astype(BF16)
    A_bd = jnp.einsum("bc,bij->bicj", jnp.eye(B, dtype=A.dtype), A)
    A_bd = A_bd.reshape(B * N, B * N).astype(BF16)
    x2_bf = x2.astype(BF16)
    # Per-graph node-sum segment matrix, precomputed as a constant input.
    seg = jnp.repeat(jnp.eye(B, dtype=jnp.float32), N, axis=1).astype(BF16)   # (B, B*N)

    # graph_pre: fuse fc_hidden and the skip projection fc_1 into one (Din, 2H) weight.
    gpw = jnp.concatenate([params["gp_w"], params["gp_wsc"]], axis=1).astype(BF16)
    gpb = jnp.concatenate([params["gp_b"], params["gp_bsc"]], axis=1)         # f32 (1, 2H)

    if num_layer > 0:
        lw = jnp.stack(params["layer_w"], axis=0).astype(BF16)                # (L, H, H)
        lb = jnp.stack(params["layer_b"], axis=0)                             # (L, 1, H)
    else:
        lw = jnp.zeros((1, H, H), BF16)
        lb = jnp.zeros((1, 1, H), jnp.float32)

    # attention2: original single (512, 256) weight.
    a2w1 = jnp.concatenate([params["a2_w1a"], params["a2_w1b"]], axis=0).astype(BF16)

    # Lane-dense prediction head: zero-pad num_class up to a multiple of 128.
    nc_pad = ((num_class + LANE - 1) // LANE) * LANE
    wp = jnp.zeros((H2, nc_pad), jnp.float32).at[:, :num_class].set(params["w_pred"])
    wp = wp.astype(BF16)
    bp = jnp.zeros((1, nc_pad), jnp.float32).at[:, :num_class].set(params["b_pred"])

    operands = (
        x1_flat, A_bd, x2_bf, seg,                           # 0..3
        gpw, gpb,                                            # 4..5
        lw, lb,                                              # 6..7
        params["w_fa"].astype(BF16), params["b_fa"],         # 8..9
        params["w_h1"].astype(BF16), params["b_h1"],         # 10..11  (w_h1 -> ANY)
        params["w_h2"].astype(BF16), params["b_h2"],         # 12..13  (w_h2 -> ANY)
        a2w1, params["a2_b1"], params["a2_w2"], params["a2_b2"],   # 14..17
        wp, bp)                                              # 18..19

    vmem_spec = pl.BlockSpec(memory_space=pltpu.MemorySpace.VMEM)
    any_spec = pl.BlockSpec(memory_space=pl.ANY)
    in_specs = [vmem_spec] * len(operands)
    in_specs[10] = any_spec      # w_h1: stays in HBM, async-copied inside the kernel
    in_specs[12] = any_spec      # w_h2: stays in HBM, async-copied inside the kernel

    flops = 2 * (
        B * N * Din * 2 * H + B * N * (B * N) * H                         # graph_pre
        + num_layer * (B * N * H * H + B * N * (B * N) * H)               # layer stack
        + B * (B * N) * H + B * H * H2                                    # FA sum + proj
        + B * E * Hh + B * Hh * H2                                        # HNE
        + B * (2 * H2) * H2 + B * H2 * 2                                  # attention2
        + B * H2 * nc_pad)                                                # fc_pred
    bytes_accessed = int(sum(op.size * op.dtype.itemsize for op in operands)
                         + B * nc_pad * 4)

    kernel = functools.partial(_deepatc_fused_kernel, N, num_layer)
    out = pl.pallas_call(
        kernel,
        out_shape=jax.ShapeDtypeStruct((B, nc_pad), jnp.float32),
        in_specs=in_specs,
        out_specs=vmem_spec,
        scratch_shapes=[
            pltpu.VMEM((E, Hh), BF16),       # w_h1 landing buffer
            pltpu.VMEM((Hh, H2), BF16),      # w_h2 landing buffer
            pltpu.SemaphoreType.DMA((2,)),
        ],
        compiler_params=pltpu.CompilerParams(vmem_limit_bytes=16 * 1024 * 1024),
        cost_estimate=pl.CostEstimate(flops=flops, transcendentals=8 * B,
                                      bytes_accessed=bytes_accessed),
    )(*operands)
    return out[:, :num_class]


# ----------------------------------------------------------------------------
# Pure-JAX f32 reference (mirrors the PyTorch op order exactly, incl. attention1).
# ----------------------------------------------------------------------------
def deepatc_reference(x1, A, x2, params, num_layer):
    xw = jnp.einsum("bnd,dh->bnh", x1, params["gp_w"]) + params["gp_b"]
    xn = jnp.einsum("bnm,bmh->bnh", A, xw)
    xs = jnp.einsum("bnd,dh->bnh", x1, params["gp_wsc"]) + params["gp_bsc"]
    x = _leaky(xs + xn)
    for l in range(num_layer):
        xw = jnp.einsum("bnh,hk->bnk", x, params["layer_w"][l]) + params["layer_b"][l]
        xn = jnp.einsum("bnm,bmh->bnh", A, xw)
        x = _leaky(x + xn)
    t = jnp.einsum("bnh,hk->bnk", x, params["w_fa"]) + params["b_fa"]
    x1p = jnp.sum(t, axis=1)
    h = _leaky(x2 @ params["w_h1"] + params["b_h1"])
    x2h = _leaky(h @ params["w_h2"] + params["b_h2"])

    def att1(v):  # nn.Softmax() -> dim=1 for 2D input; (B,1) logits -> all ones
        return jax.nn.softmax(v @ params["a1_w"] + params["a1_b"], axis=1)

    x1a = x1p * att1(x1p)
    x2a = x2h * att1(x2h)
    cat = jnp.concatenate([x1a, x2a], axis=1)
    a2w1 = jnp.concatenate([params["a2_w1a"], params["a2_w1b"]], axis=0)
    h2 = _relu(cat @ a2w1 + params["a2_b1"])
    c = jax.nn.softmax(h2 @ params["a2_w2"] + params["a2_b2"], axis=1)
    xf = x1a + x2a + x1a * c[:, 0:1] + x2a * c[:, 1:2]
    return xf @ params["w_pred"] + params["b_pred"]


# ----------------------------------------------------------------------------
# Deterministic parameter init (PyTorch-Linear-style uniform, seeded)
# ----------------------------------------------------------------------------
def _init_linear(key, fan_in, fan_out):
    kw, kb = jax.random.split(key)
    bound = 1.0 / (fan_in ** 0.5)
    w = jax.random.uniform(kw, (fan_in, fan_out), jnp.float32, -bound, bound)
    b = jax.random.uniform(kb, (1, fan_out), jnp.float32, -bound, bound)
    return w, b


if __name__ == "__main__":
    # ----- config (args) -----
    B, N = 2, 8
    input_dim = 16
    hidden_size = 32
    num_layer = 2
    embed_in = 64
    hidden_size2 = 256      # forced by FA's hard-coded Linear(256,1)/Linear(512,256)
    num_class = 8

    key = jax.random.PRNGKey(0)
    ks = list(jax.random.split(key, 20))

    params = {}
    # graph_pre: Graph_Conv(input_dim, hidden) with 'sc' skip (fc_1 projection)
    params["gp_w"], params["gp_b"] = _init_linear(ks[0], input_dim, hidden_size)
    params["gp_wsc"], params["gp_bsc"] = _init_linear(ks[1], input_dim, hidden_size)
    # stacked Graph_Conv(hidden, hidden)
    params["layer_w"], params["layer_b"] = [], []
    for l in range(num_layer):
        w, b = _init_linear(ks[2 + l], hidden_size, hidden_size)
        params["layer_w"].append(w)
        params["layer_b"].append(b)
    # FA.fc_hidden: hidden -> hidden_size2
    params["w_fa"], params["b_fa"] = _init_linear(ks[6], hidden_size, hidden_size2)
    # HNE: embed_in -> 1024 -> hidden_size2
    params["w_h1"], params["b_h1"] = _init_linear(ks[7], embed_in, 1024)
    params["w_h2"], params["b_h2"] = _init_linear(ks[8], 1024, hidden_size2)
    # attention1: Linear(256, 1) (mathematically a no-op; kept for the reference check)
    params["a1_w"], params["a1_b"] = _init_linear(ks[9], 256, 1)
    # attention2: Linear(512, 256), ReLU, Linear(256, 2)
    a2_w1, params["a2_b1"] = _init_linear(ks[10], 512, 256)
    params["a2_w1a"] = a2_w1[:256, :]
    params["a2_w1b"] = a2_w1[256:, :]
    params["a2_w2"], params["a2_b2"] = _init_linear(ks[11], 256, 2)
    # fc_pred: hidden_size2 -> num_class
    params["w_pred"], params["b_pred"] = _init_linear(ks[12], hidden_size2, num_class)

    # ----- inputs -----
    x1 = jax.random.normal(ks[13], (B, N, input_dim), jnp.float32)
    A = jax.random.uniform(ks[14], (B, N, N), jnp.float32)
    A = A / jnp.sum(A, axis=-1, keepdims=True)           # row-normalized adjacency
    x2 = jax.random.normal(ks[15], (B, embed_in), jnp.float32)

    # TODO(synk): Dropout / BatchNorm1d / fc_h1 (unused in forward) are identity / omitted (eval mode).
    y_pred = deepatc_forward(x1, A, x2, params, num_layer)
    jax.block_until_ready(y_pred)
    assert y_pred.shape == (B, num_class) and y_pred.dtype == jnp.float32

    # f32 reference; tolerance loosened for the bf16 matmul-operand cast (review item).
    y_ref = deepatc_reference(x1, A, x2, params, num_layer)
    assert jnp.allclose(y_pred, y_ref, rtol=5e-2, atol=5e-2), (
        f"max abs diff {float(jnp.max(jnp.abs(y_pred - y_ref)))}")
    print("KERNEL_OK")
</pallas_src>

<mosaic_0001>
module attributes {stable_mosaic.version = 11 : i64} {
  func.func @_deepatc_fused_kernel(%arg0: memref<16x16xbf16, #tpu.memory_space<vmem>>, %arg1: memref<16x16xbf16, #tpu.memory_space<vmem>>, %arg2: memref<2x64xbf16, #tpu.memory_space<vmem>>, %arg3: memref<2x16xbf16, #tpu.memory_space<vmem>>, %arg4: memref<16x64xbf16, #tpu.memory_space<vmem>>, %arg5: memref<1x64xf32, #tpu.memory_space<vmem>>, %arg6: memref<2x32x32xbf16, #tpu.memory_space<vmem>>, %arg7: memref<2x1x32xf32, #tpu.memory_space<vmem>>, %arg8: memref<32x256xbf16, #tpu.memory_space<vmem>>, %arg9: memref<1x256xf32, #tpu.memory_space<vmem>>, %arg10: memref<64x1024xbf16, #tpu.memory_space<any>>, %arg11: memref<1x1024xf32, #tpu.memory_space<vmem>>, %arg12: memref<1024x256xbf16, #tpu.memory_space<any>>, %arg13: memref<1x256xf32, #tpu.memory_space<vmem>>, %arg14: memref<512x256xbf16, #tpu.memory_space<vmem>>, %arg15: memref<1x256xf32, #tpu.memory_space<vmem>>, %arg16: memref<256x2xf32, #tpu.memory_space<vmem>>, %arg17: memref<1x2xf32, #tpu.memory_space<vmem>>, %arg18: memref<256x128xbf16, #tpu.memory_space<vmem>>, %arg19: memref<1x128xf32, #tpu.memory_space<vmem>>, %arg20: memref<2x128xf32, #tpu.memory_space<vmem>>, %arg21: memref<64x1024xbf16, #tpu.memory_space<vmem>>, %arg22: memref<1024x256xbf16, #tpu.memory_space<vmem>>, %arg23: memref<2x!tpu.dma_semaphore, #tpu.memory_space<semaphore_mem>>) attributes {dimension_semantics = [], scalar_prefetch = 0 : i64, scratch_operands = 3 : i64, tpu.core_type = #tpu.core_type<tc>} {
    %c0_i32 = arith.constant 0 : i32
    %0 = tpu.memref_slice %arg23[%c0_i32] : memref<2x!tpu.dma_semaphore, #tpu.memory_space<semaphore_mem>> -> memref<1x!tpu.dma_semaphore, #tpu.memory_space<semaphore_mem>>
    %1 = tpu.memref_squeeze %0 : memref<1x!tpu.dma_semaphore, #tpu.memory_space<semaphore_mem>> -> memref<!tpu.dma_semaphore, #tpu.memory_space<semaphore_mem>>
    tpu.enqueue_dma source(%arg10 : memref<64x1024xbf16, #tpu.memory_space<any>>) target(%arg21 : memref<64x1024xbf16, #tpu.memory_space<vmem>>) target_semaphore(%1 : memref<!tpu.dma_semaphore, #tpu.memory_space<semaphore_mem>>)
    %c1_i32 = arith.constant 1 : i32
    %2 = tpu.memref_slice %arg23[%c1_i32] : memref<2x!tpu.dma_semaphore, #tpu.memory_space<semaphore_mem>> -> memref<1x!tpu.dma_semaphore, #tpu.memory_space<semaphore_mem>>
    %3 = tpu.memref_squeeze %2 : memref<1x!tpu.dma_semaphore, #tpu.memory_space<semaphore_mem>> -> memref<!tpu.dma_semaphore, #tpu.memory_space<semaphore_mem>>
    tpu.enqueue_dma source(%arg12 : memref<1024x256xbf16, #tpu.memory_space<any>>) target(%arg22 : memref<1024x256xbf16, #tpu.memory_space<vmem>>) target_semaphore(%3 : memref<!tpu.dma_semaphore, #tpu.memory_space<semaphore_mem>>)
    %c0 = arith.constant 0 : index
    %c0_0 = arith.constant 0 : index
    %4 = vector.load %arg0[%c0, %c0_0] : memref<16x16xbf16, #tpu.memory_space<vmem>>, vector<16x16xbf16>
    %c0_1 = arith.constant 0 : index
    %c0_2 = arith.constant 0 : index
    %5 = vector.load %arg1[%c0_1, %c0_2] : memref<16x16xbf16, #tpu.memory_space<vmem>>, vector<16x16xbf16>
    %c0_3 = arith.constant 0 : index
    %c0_4 = arith.constant 0 : index
    %6 = vector.load %arg4[%c0_3, %c0_4] : memref<16x64xbf16, #tpu.memory_space<vmem>>, vector<16x64xbf16>
    %cst = arith.constant dense<0.000000e+00> : vector<16x64xf32>
    %7 = tpu.matmul %4, %6, %cst {dimension_numbers = #tpu.dot_dimension_numbers<[1], [0], [0], [1], [0, 0, 1, 1], [], []>} : vector<16x16xbf16>, vector<16x64xbf16>, vector<16x64xf32> -> vector<16x64xf32>
    %c0_5 = arith.constant 0 : index
    %c0_6 = arith.constant 0 : index
    %8 = vector.load %arg5[%c0_5, %c0_6] : memref<1x64xf32, #tpu.memory_space<vmem>>, vector<1x64xf32>
    %9 = vector.broadcast %8 : vector<1x64xf32> to vector<16x64xf32>
    %10 = arith.addf %7, %9 : vector<16x64xf32>
    %11 = vector.extract_strided_slice %10 {offsets = [0, 0], sizes = [16, 32], strides = [1, 1]} : vector<16x64xf32> to vector<16x32xf32>
    %12 = vector.extract_strided_slice %10 {offsets = [0, 32], sizes = [16, 32], strides = [1, 1]} : vector<16x64xf32> to vector<16x32xf32>
    %13 = arith.truncf %11 : vector<16x32xf32> to vector<16x32xbf16>
    %cst_7 = arith.constant dense<0.000000e+00> : vector<16x32xf32>
    %14 = tpu.matmul %5, %13, %cst_7 {dimension_numbers = #tpu.dot_dimension_numbers<[1], [0], [0], [1], [0, 0, 1, 1], [], []>} : vector<16x16xbf16>, vector<16x32xbf16>, vector<16x32xf32> -> vector<16x32xf32>
    %15 = arith.addf %12, %14 : vector<16x32xf32>
    %cst_8 = arith.constant 0.000000e+00 : f32
    %16 = vector.broadcast %cst_8 : f32 to vector<16x32xf32>
    %17 = arith.cmpf ogt, %15, %16 : vector<16x32xf32>
    %cst_9 = arith.constant 0.00999999977 : f32
    %18 = vector.broadcast %cst_9 : f32 to vector<16x32xf32>
    %19 = arith.mulf %18, %15 : vector<16x32xf32>
    %20 = arith.select %17, %15, %19 : vector<16x32xi1>, vector<16x32xf32>
    %21 = arith.truncf %20 : vector<16x32xf32> to vector<16x32xbf16>
    %c0_10 = arith.constant 0 : index
    %c0_11 = arith.constant 0 : index
    %c0_12 = arith.constant 0 : index
    %22 = vector.load %arg6[%c0_10, %c0_11, %c0_12] : memref<2x32x32xbf16, #tpu.memory_space<vmem>>, vector<1x32x32xbf16>
    %23 = vector.shape_cast %22 : vector<1x32x32xbf16> to vector<32x32xbf16>
    %cst_13 = arith.constant dense<0.000000e+00> : vector<16x32xf32>
    %24 = tpu.matmul %21, %23, %cst_13 {dimension_numbers = #tpu.dot_dimension_numbers<[1], [0], [0], [1], [0, 0, 1, 1], [], []>} : vector<16x32xbf16>, vector<32x32xbf16>, vector<16x32xf32> -> vector<16x32xf32>
    %c0_14 = arith.constant 0 : index
    %c0_15 = arith.constant 0 : index
    %c0_16 = arith.constant 0 : index
    %25 = vector.load %arg7[%c0_14, %c0_15, %c0_16] : memref<2x1x32xf32, #tpu.memory_space<vmem>>, vector<1x1x32xf32>
    %26 = vector.shape_cast %25 : vector<1x1x32xf32> to vector<1x32xf32>
    %27 = vector.broadcast %26 : vector<1x32xf32> to vector<16x32xf32>
    %28 = arith.addf %24, %27 : vector<16x32xf32>
    %29 = arith.truncf %28 : vector<16x32xf32> to vector<16x32xbf16>
    %cst_17 = arith.constant dense<0.000000e+00> : vector<16x32xf32>
    %30 = tpu.matmul %5, %29, %cst_17 {dimension_numbers = #tpu.dot_dimension_numbers<[1], [0], [0], [1], [0, 0, 1, 1], [], []>} : vector<16x16xbf16>, vector<16x32xbf16>, vector<16x32xf32> -> vector<16x32xf32>
    %31 = arith.addf %20, %30 : vector<16x32xf32>
    %cst_18 = arith.constant 0.000000e+00 : f32
    %32 = vector.broadcast %cst_18 : f32 to vector<16x32xf32>
    %33 = arith.cmpf ogt, %31, %32 : vector<16x32xf32>
    %cst_19 = arith.constant 0.00999999977 : f32
    %34 = vector.broadcast %cst_19 : f32 to vector<16x32xf32>
    %35 = arith.mulf %34, %31 : vector<16x32xf32>
    %36 = arith.select %33, %31, %35 : vector<16x32xi1>, vector<16x32xf32>
    %37 = arith.truncf %36 : vector<16x32xf32> to vector<16x32xbf16>
    %c1 = arith.constant 1 : index
    %c0_20 = arith.constant 0 : index
    %c0_21 = arith.constant 0 : index
    %38 = vector.load %arg6[%c1, %c0_20, %c0_21] : memref<2x32x32xbf16, #tpu.memory_space<vmem>>, vector<1x32x32xbf16>
    %39 = vector.shape_cast %38 : vector<1x32x32xbf16> to vector<32x32xbf16>
    %cst_22 = arith.constant dense<0.000000e+00> : vector<16x32xf32>
    %40 = tpu.matmul %37, %39, %cst_22 {dimension_numbers = #tpu.dot_dimension_numbers<[1], [0], [0], [1], [0, 0, 1, 1], [], []>} : vector<16x32xbf16>, vector<32x32xbf16>, vector<16x32xf32> -> vector<16x32xf32>
    %c1_23 = arith.constant 1 : index
    %c0_24 = arith.constant 0 : index
    %c0_25 = arith.constant 0 : index
    %41 = vector.load %arg7[%c1_23, %c0_24, %c0_25] : memref<2x1x32xf32, #tpu.memory_space<vmem>>, vector<1x1x32xf32>
    %42 = vector.shape_cast %41 : vector<1x1x32xf32> to vector<1x32xf32>
    %43 = vector.broadcast %42 : vector<1x32xf32> to vector<16x32xf32>
    %44 = arith.addf %40, %43 : vector<16x32xf32>
    %45 = arith.truncf %44 : vector<16x32xf32> to vector<16x32xbf16>
    %cst_26 = arith.constant dense<0.000000e+00> : vector<16x32xf32>
    %46 = tpu.matmul %5, %45, %cst_26 {dimension_numbers = #tpu.dot_dimension_numbers<[1], [0], [0], [1], [0, 0, 1, 1], [], []>} : vector<16x16xbf16>, vector<16x32xbf16>, vector<16x32xf32> -> vector<16x32xf32>
    %47 = arith.addf %36, %46 : vector<16x32xf32>
    %cst_27 = arith.constant 0.000000e+00 : f32
    %48 = vector.broadcast %cst_27 : f32 to vector<16x32xf32>
    %49 = arith.cmpf ogt, %47, %48 : vector<16x32xf32>
    %cst_28 = arith.constant 0.00999999977 : f32
    %50 = vector.broadcast %cst_28 : f32 to vector<16x32xf32>
    %51 = arith.mulf %50, %47 : vector<16x32xf32>
    %52 = arith.select %49, %47, %51 : vector<16x32xi1>, vector<16x32xf32>
    %c0_29 = arith.constant 0 : index
    %c0_30 = arith.constant 0 : index
    %53 = vector.load %arg3[%c0_29, %c0_30] : memref<2x16xbf16, #tpu.memory_space<vmem>>, vector<2x16xbf16>
    %54 = arith.truncf %52 : vector<16x32xf32> to vector<16x32xbf16>
    %cst_31 = arith.constant dense<0.000000e+00> : vector<2x32xf32>
    %55 = tpu.matmul %53, %54, %cst_31 {dimension_numbers = #tpu.dot_dimension_numbers<[1], [0], [0], [1], [0, 0, 1, 1], [], []>} : vector<2x16xbf16>, vector<16x32xbf16>, vector<2x32xf32> -> vector<2x32xf32>
    %56 = arith.truncf %55 : vector<2x32xf32> to vector<2x32xbf16>
    %c0_32 = arith.constant 0 : index
    %c0_33 = arith.constant 0 : index
    %57 = vector.load %arg8[%c0_32, %c0_33] : memref<32x256xbf16, #tpu.memory_space<vmem>>, vector<32x256xbf16>
    %cst_34 = arith.constant dense<0.000000e+00> : vector<2x256xf32>
    %58 = tpu.matmul %56, %57, %cst_34 {dimension_numbers = #tpu.dot_dimension_numbers<[1], [0], [0], [1], [0, 0, 1, 1], [], []>} : vector<2x32xbf16>, vector<32x256xbf16>, vector<2x256xf32> -> vector<2x256xf32>
    %c0_35 = arith.constant 0 : index
    %c0_36 = arith.constant 0 : index
    %59 = vector.load %arg9[%c0_35, %c0_36] : memref<1x256xf32, #tpu.memory_space<vmem>>, vector<1x256xf32>
    %cst_37 = arith.constant 8.000000e+00 : f32
    %60 = vector.broadcast %cst_37 : f32 to vector<1x256xf32>
    %61 = arith.mulf %60, %59 : vector<1x256xf32>
    %62 = vector.broadcast %61 : vector<1x256xf32> to vector<2x256xf32>
    %63 = arith.addf %58, %62 : vector<2x256xf32>
    %c0_i32_38 = arith.constant 0 : i32
    %64 = tpu.memref_slice %arg23[%c0_i32_38] : memref<2x!tpu.dma_semaphore, #tpu.memory_space<semaphore_mem>> -> memref<1x!tpu.dma_semaphore, #tpu.memory_space<semaphore_mem>>
    %65 = tpu.memref_squeeze %64 : memref<1x!tpu.dma_semaphore, #tpu.memory_space<semaphore_mem>> -> memref<!tpu.dma_semaphore, #tpu.memory_space<semaphore_mem>>
    tpu.wait_dma2 semaphore(%65 : memref<!tpu.dma_semaphore, #tpu.memory_space<semaphore_mem>>) src(%arg10 : memref<64x1024xbf16, #tpu.memory_space<any>>) dst(%arg21 : memref<64x1024xbf16, #tpu.memory_space<vmem>>)
    %c1_i32_39 = arith.constant 1 : i32
    %66 = tpu.memref_slice %arg23[%c1_i32_39] : memref<2x!tpu.dma_semaphore, #tpu.memory_space<semaphore_mem>> -> memref<1x!tpu.dma_semaphore, #tpu.memory_space<semaphore_mem>>
    %67 = tpu.memref_squeeze %66 : memref<1x!tpu.dma_semaphore, #tpu.memory_space<semaphore_mem>> -> memref<!tpu.dma_semaphore, #tpu.memory_space<semaphore_mem>>
    tpu.wait_dma2 semaphore(%67 : memref<!tpu.dma_semaphore, #tpu.memory_space<semaphore_mem>>) src(%arg12 : memref<1024x256xbf16, #tpu.memory_space<any>>) dst(%arg22 : memref<1024x256xbf16, #tpu.memory_space<vmem>>)
    %c0_40 = arith.constant 0 : index
    %c0_41 = arith.constant 0 : index
    %68 = vector.load %arg2[%c0_40, %c0_41] : memref<2x64xbf16, #tpu.memory_space<vmem>>, vector<2x64xbf16>
    %c0_42 = arith.constant 0 : index
    %c0_43 = arith.constant 0 : index
    %69 = vector.load %arg21[%c0_42, %c0_43] : memref<64x1024xbf16, #tpu.memory_space<vmem>>, vector<64x1024xbf16>
    %cst_44 = arith.constant dense<0.000000e+00> : vector<2x1024xf32>
    %70 = tpu.matmul %68, %69, %cst_44 {dimension_numbers = #tpu.dot_dimension_numbers<[1], [0], [0], [1], [0, 0, 1, 1], [], []>} : vector<2x64xbf16>, vector<64x1024xbf16>, vector<2x1024xf32> -> vector<2x1024xf32>
    %c0_45 = arith.constant 0 : index
    %c0_46 = arith.constant 0 : index
    %71 = vector.load %arg11[%c0_45, %c0_46] : memref<1x1024xf32, #tpu.memory_space<vmem>>, vector<1x1024xf32>
    %72 = vector.broadcast %71 : vector<1x1024xf32> to vector<2x1024xf32>
    %73 = arith.addf %70, %72 : vector<2x1024xf32>
    %cst_47 = arith.constant 0.000000e+00 : f32
    %74 = vector.broadcast %cst_47 : f32 to vector<2x1024xf32>
    %75 = arith.cmpf ogt, %73, %74 : vector<2x1024xf32>
    %cst_48 = arith.constant 0.00999999977 : f32
    %76 = vector.broadcast %cst_48 : f32 to vector<2x1024xf32>
    %77 = arith.mulf %76, %73 : vector<2x1024xf32>
    %78 = arith.select %75, %73, %77 : vector<2x1024xi1>, vector<2x1024xf32>
    %79 = arith.truncf %78 : vector<2x1024xf32> to vector<2x1024xbf16>
    %c0_49 = arith.constant 0 : index
    %c0_50 = arith.constant 0 : index
    %80 = vector.load %arg22[%c0_49, %c0_50] : memref<1024x256xbf16, #tpu.memory_space<vmem>>, vector<1024x256xbf16>
    %cst_51 = arith.constant dense<0.000000e+00> : vector<2x256xf32>
    %81 = tpu.matmul %79, %80, %cst_51 {dimension_numbers = #tpu.dot_dimension_numbers<[1], [0], [0], [1], [0, 0, 1, 1], [], []>} : vector<2x1024xbf16>, vector<1024x256xbf16>, vector<2x256xf32> -> vector<2x256xf32>
    %c0_52 = arith.constant 0 : index
    %c0_53 = arith.constant 0 : index
    %82 = vector.load %arg13[%c0_52, %c0_53] : memref<1x256xf32, #tpu.memory_space<vmem>>, vector<1x256xf32>
    %83 = vector.broadcast %82 : vector<1x256xf32> to vector<2x256xf32>
    %84 = arith.addf %81, %83 : vector<2x256xf32>
    %cst_54 = arith.constant 0.000000e+00 : f32
    %85 = vector.broadcast %cst_54 : f32 to vector<2x256xf32>
    %86 = arith.cmpf ogt, %84, %85 : vector<2x256xf32>
    %cst_55 = arith.constant 0.00999999977 : f32
    %87 = vector.broadcast %cst_55 : f32 to vector<2x256xf32>
    %88 = arith.mulf %87, %84 : vector<2x256xf32>
    %89 = arith.select %86, %84, %88 : vector<2x256xi1>, vector<2x256xf32>
    %90 = tpu.concatenate %63, %89 in 1 : vector<2x256xf32>, vector<2x256xf32> -> vector<2x512xf32>
    %91 = arith.truncf %90 : vector<2x512xf32> to vector<2x512xbf16>
    %c0_56 = arith.constant 0 : index
    %c0_57 = arith.constant 0 : index
    %92 = vector.load %arg14[%c0_56, %c0_57] : memref<512x256xbf16, #tpu.memory_space<vmem>>, vector<512x256xbf16>
    %cst_58 = arith.constant dense<0.000000e+00> : vector<2x256xf32>
    %93 = tpu.matmul %91, %92, %cst_58 {dimension_numbers = #tpu.dot_dimension_numbers<[1], [0], [0], [1], [0, 0, 1, 1], [], []>} : vector<2x512xbf16>, vector<512x256xbf16>, vector<2x256xf32> -> vector<2x256xf32>
    %c0_59 = arith.constant 0 : index
    %c0_60 = arith.constant 0 : index
    %94 = vector.load %arg15[%c0_59, %c0_60] : memref<1x256xf32, #tpu.memory_space<vmem>>, vector<1x256xf32>
    %95 = vector.broadcast %94 : vector<1x256xf32> to vector<2x256xf32>
    %96 = arith.addf %93, %95 : vector<2x256xf32>
    %cst_61 = arith.constant 0.000000e+00 : f32
    %97 = vector.broadcast %cst_61 : f32 to vector<2x256xf32>
    %98 = arith.maximumf %96, %97 : vector<2x256xf32>
    %c0_62 = arith.constant 0 : index
    %c0_63 = arith.constant 0 : index
    %99 = vector.load %arg16[%c0_62, %c0_63] : memref<256x2xf32, #tpu.memory_space<vmem>>, vector<256x2xf32>
    %cst_64 = arith.constant dense<0.000000e+00> : vector<2x2xf32>
    %100 = tpu.matmul %98, %99, %cst_64 {dimension_numbers = #tpu.dot_dimension_numbers<[1], [0], [0], [1], [0, 0, 1, 1], [], []>} : vector<2x256xf32>, vector<256x2xf32>, vector<2x2xf32> -> vector<2x2xf32>
    %c0_65 = arith.constant 0 : index
    %c0_66 = arith.constant 0 : index
    %101 = vector.load %arg17[%c0_65, %c0_66] : memref<1x2xf32, #tpu.memory_space<vmem>>, vector<1x2xf32>
    %102 = vector.broadcast %101 : vector<1x2xf32> to vector<2x2xf32>
    %103 = arith.addf %100, %102 : vector<2x2xf32>
    %cst_67 = arith.constant dense<0xFF800000> : vector<2xf32>
    %104 = vector.multi_reduction <maximumf>, %103, %cst_67 [1] : vector<2x2xf32> to vector<2xf32>
    %cst_68 = arith.constant 0xFF800000 : f32
    %105 = vector.broadcast %cst_68 : f32 to vector<2xf32>
    %106 = arith.maximumf %105, %104 : vector<2xf32>
    %107 = vector.shape_cast %106 : vector<2xf32> to vector<2x1xf32>
    %108 = vector.broadcast %107 : vector<2x1xf32> to vector<2x2xf32>
    %109 = arith.subf %103, %108 : vector<2x2xf32>
    %110 = math.exp %109 : vector<2x2xf32>
    %cst_69 = arith.constant dense<0.000000e+00> : vector<2xf32>
    %111 = vector.multi_reduction <add>, %110, %cst_69 [1] : vector<2x2xf32> to vector<2xf32>
    %112 = vector.shape_cast %111 : vector<2xf32> to vector<2x1xf32>
    %113 = vector.broadcast %112 : vector<2x1xf32> to vector<2x2xf32>
    %114 = arith.divf %110, %113 : vector<2x2xf32>
    %115 = arith.addf %63, %89 : vector<2x256xf32>
    %116 = vector.extract_strided_slice %114 {offsets = [0, 0], sizes = [2, 1], strides = [1, 1]} : vector<2x2xf32> to vector<2x1xf32>
    %117 = vector.broadcast %116 : vector<2x1xf32> to vector<2x256xf32>
    %118 = arith.mulf %63, %117 : vector<2x256xf32>
    %119 = arith.addf %115, %118 : vector<2x256xf32>
    %120 = vector.extract_strided_slice %114 {offsets = [0, 1], sizes = [2, 1], strides = [1, 1]} : vector<2x2xf32> to vector<2x1xf32>
    %121 = vector.broadcast %120 : vector<2x1xf32> to vector<2x256xf32>
    %122 = arith.mulf %89, %121 : vector<2x256xf32>
    %123 = arith.addf %119, %122 : vector<2x256xf32>
    %124 = arith.truncf %123 : vector<2x256xf32> to vector<2x256xbf16>
    %c0_70 = arith.constant 0 : index
    %c0_71 = arith.constant 0 : index
    %125 = vector.load %arg18[%c0_70, %c0_71] : memref<256x128xbf16, #tpu.memory_space<vmem>>, vector<256x128xbf16>
    %cst_72 = arith.constant dense<0.000000e+00> : vector<2x128xf32>
    %126 = tpu.matmul %124, %125, %cst_72 {dimension_numbers = #tpu.dot_dimension_numbers<[1], [0], [0], [1], [0, 0, 1, 1], [], []>} : vector<2x256xbf16>, vector<256x128xbf16>, vector<2x128xf32> -> vector<2x128xf32>
    %c0_73 = arith.constant 0 : index
    %c0_74 = arith.constant 0 : index
    %127 = vector.load %arg19[%c0_73, %c0_74] : memref<1x128xf32, #tpu.memory_space<vmem>>, vector<1x128xf32>
    %128 = vector.broadcast %127 : vector<1x128xf32> to vector<2x128xf32>
    %129 = arith.addf %126, %128 : vector<2x128xf32>
    %c0_75 = arith.constant 0 : index
    %c0_76 = arith.constant 0 : index
    %130 = vector.load %arg20[%c0_75, %c0_76] : memref<2x128xf32, #tpu.memory_space<vmem>>, vector<2x128xf32>
    tpu.vector_store %arg20[%c0_75, %c0_76], %129 {strides = array<i32>} : memref<2x128xf32, #tpu.memory_space<vmem>>, vector<2x128xf32>,
    return
  }
}

</mosaic_0001>

<llo_original>
// kernel: tpu_custom_call.1
$region0: #{tpu_custom_call.1}
  #allocation0 [shape = 'u32[]', space=smem, size = 0x4, offset = 0x4, fixed_abs, tag = 'smem constant byte address 0x4 - core index']
  #allocation1 [shape = 'u32[144,128]{1,0:T(1,128)}', space=vmem, size = 0x12000, scoped, tag = 'internal scratch']
  #allocation2 [shape = 'bf16[64,1024]{1,0:T(16,128)(2,1)}', space=vmem, size = 0x20000, scoped, tag = 'scratch operand']
  #allocation3 [shape = 'bf16[1024,256]{1,0:T(16,128)(2,1)}', space=vmem, size = 0x80000, scoped, tag = 'scratch operand']
  #allocation4 [shape = 's32[2]{0}', space=sflag, size = 0x8, scoped, tag = 'scratch operand']
  #allocation23 [shape = 's32[]', space=sflag, size = 0x4, offset = 0, fixed_abs, tag = 'sflag constant byte address 0x0 - dummy sync flag']
  #allocation24 [shape = 's32[]', space=sflag, size = 0x4, offset = 0, fixed_abs, tag = 'sflag constant byte address 0x0 - dummy sync flag']
  %s0 = inlined_call_operand.vmem [shape: bf16[16,16], index: 0, kind: input, shape index: {}]
  %s1 = inlined_call_operand.hbm [shape: bf16[16,16], index: 1, kind: input, shape index: {}]
  %s2 = inlined_call_operand.vmem [shape: bf16[2,64], index: 2, kind: input, shape index: {}]
  %s3 = inlined_call_operand.hbm [shape: bf16[2,16], index: 3, kind: input, shape index: {}]
  %s4 = inlined_call_operand.hbm [shape: bf16[16,64], index: 4, kind: input, shape index: {}]
  %s5 = inlined_call_operand.hbm [shape: f32[1,64], index: 5, kind: input, shape index: {}]
  %s6 = inlined_call_operand.vmem [shape: bf16[2,32,32], index: 6, kind: input, shape index: {}]
  %s7 = inlined_call_operand.hbm [shape: f32[2,1,32], index: 7, kind: input, shape index: {}]
  %s8 = inlined_call_operand.hbm [shape: bf16[32,256], index: 8, kind: input, shape index: {}]
  %s9 = inlined_call_operand.hbm [shape: f32[1,256], index: 9, kind: input, shape index: {}]
  %s10 = inlined_call_operand.vmem [shape: bf16[64,1024], index: 10, kind: input, shape index: {}]
  %s11 = inlined_call_operand.hbm [shape: f32[1,1024], index: 11, kind: input, shape index: {}]
  %s12 = inlined_call_operand.hbm [shape: bf16[1024,256], index: 12, kind: input, shape index: {}]
  %s13 = inlined_call_operand.vmem [shape: f32[1,256], index: 13, kind: input, shape index: {}]
  %s14 = inlined_call_operand.hbm [shape: bf16[512,256], index: 14, kind: input, shape index: {}]
  %s15 = inlined_call_operand.vmem [shape: f32[1,256], index: 15, kind: input, shape index: {}]
  %s16 = inlined_call_operand.vmem [shape: f32[256,2], index: 16, kind: input, shape index: {}]
  %s17 = inlined_call_operand.vmem [shape: f32[1,2], index: 17, kind: input, shape index: {}]
  %s18 = inlined_call_operand.hbm [shape: bf16[256,128], index: 18, kind: input, shape index: {}]
  %s19 = inlined_call_operand.vmem [shape: f32[1,128], index: 19, kind: input, shape index: {}]
  %s20 = inlined_call_operand.hbm [shape: f32[2,128], index: 20, kind: output, shape index: {}]
  %s21 = sld [smem:[#allocation0]]
  $region159: #{tpu_custom_call.1} parent=0
    _
  %s23 = ssub.s32 1, %s21
  %s24 = scalar_select 0, %s23, %s21
  $region1: #{tpu_custom_call.1} parent=0
    #allocation5 [shape = 'u8[4096]{0}', space=vmem, size = 0x1000, scoped, tag = 'input window, operand 1, single buffered']
    #allocation6 [shape = 's32[1]{0}', space=sflag, size = 0x4, scoped, tag = 'scoped memory for tpu_custom_call.1']
    #allocation7 [shape = 's32[1]{0}', space=sflag, size = 0x4, scoped, tag = 'scoped memory for tpu_custom_call.1']
    #allocation8 [shape = 'u8[512]{0}', space=vmem, size = 0x400, scoped, tag = 'input window, operand 3, single buffered']
    #allocation9 [shape = 's32[1]{0}', space=sflag, size = 0x4, scoped, tag = 'scoped memory for tpu_custom_call.1']
    #allocation10 [shape = 'u8[4096]{0}', space=vmem, size = 0x1000, scoped, tag = 'input window, operand 4, single buffered']
    #allocation11 [shape = 'u8[512]{0}', space=vmem, size = 0x400, scoped, tag = 'input window, operand 5, single buffered']
    #allocation12 [shape = 's32[1]{0}', space=sflag, size = 0x4, scoped, tag = 'scoped memory for tpu_custom_call.1']
    #allocation13 [shape = 'u8[1024]{0}', space=vmem, size = 0x400, scoped, tag = 'input window, operand 7, single buffered']
    #allocation14 [shape = 'u8[16384]{0}', space=vmem, size = 0x4000, scoped, tag = 'input window, operand 8, single buffered']
    #allocation15 [shape = 's32[1]{0}', space=sflag, size = 0x4, scoped, tag = 'scoped memory for tpu_custom_call.1']
    #allocation16 [shape = 'u8[1024]{0}', space=vmem, size = 0x400, scoped, tag = 'input window, operand 9, single buffered']
    #allocation17 [shape = 'u8[4096]{0}', space=vmem, size = 0x1000, scoped, tag = 'input window, operand 11, single buffered']
    #allocation18 [shape = 's32[1]{0}', space=sflag, size = 0x4, scoped, tag = 'scoped memory for tpu_custom_call.1']
    #allocation19 [shape = 'u8[262144]{0}', space=vmem, size = 0x40000, scoped, tag = 'input window, operand 14, single buffered']
    #allocation20 [shape = 'u8[65536]{0}', space=vmem, size = 0x10000, scoped, tag = 'input window, operand 18, single buffered']
    #allocation21 [shape = 's32[1]{0}', space=sflag, size = 0x4, scoped, tag = 'scoped memory for tpu_custom_call.1']
    #allocation22 [shape = 'u8[1024]{0}', space=vmem, size = 0x400, scoped, tag = 'output window, operand 0, single buffered']
    #allocation25 [shape = 'u32[9]{0}', space=smem, size = 0x24, scoped, tag = 'DMA stride descriptor']
    %25 = vsyncpa [#allocation6], 0
    %26 = vsyncpa [#allocation9], 0
    %27 = vsyncpa [#allocation12], 0
    %28 = vsyncpa [#allocation15], 0
    %29 = vsyncpa [#allocation18], 0
    %30 = vsyncpa [#allocation21], 0
    %31 = vsyncpa [#allocation7], 0
    // Predicated region
    $region2: #{tpu_custom_call.1} parent=1 // pred_check
      _
    $region3: #{tpu_custom_call.1} parent=1 // pred_check_branch
      %33 = sbr.rel (0) target = $region5
    $region4: #{tpu_custom_call.1} parent=1 // pred_region
      _
    $region5: #{tpu_custom_call.1} parent=1 // pred_fallthru
      _
    // Predicated region
    $region6: #{tpu_custom_call.1} parent=1 // pred_check
      _
    $region7: #{tpu_custom_call.1} parent=1 // pred_check_branch
      %35 = sbr.rel (0) target = $region9
    $region8: #{tpu_custom_call.1} parent=1 // pred_region
      %s37 = ssub.s32 128, 128
      %38 = vsyncadd [#allocation6], %s37
      %s39 = sshll.u32 [#allocation5], 4
      %s40 = int_to_ptr.vmem [resolvable:$true] %s39
      %45 = dma.hbm_to_vmem [thread:$0]  %s1, 128, %s40, [#allocation6], 64, 64, 4
    $region9: #{tpu_custom_call.1} parent=1 // pred_fallthru
      _
    // Predicated region
    $region10: #{tpu_custom_call.1} parent=1 // pred_check
      _
    $region11: #{tpu_custom_call.1} parent=1 // pred_check_branch
      %47 = sbr.rel (0) target = $region13
    $region12: #{tpu_custom_call.1} parent=1 // pred_region
      _
    $region13: #{tpu_custom_call.1} parent=1 // pred_fallthru
      _
    // Predicated region
    $region14: #{tpu_custom_call.1} parent=1 // pred_check
      _
    $region15: #{tpu_custom_call.1} parent=1 // pred_check_branch
      %49 = sbr.rel (0) target = $region17
    $region16: #{tpu_custom_call.1} parent=1 // pred_region
      %s51 = ssub.s32 16, 16
      %52 = vsyncadd [#allocation9], %s51
      %s54 = sshll.u32 [#allocation8], 4
      %s55 = int_to_ptr.vmem [resolvable:$true] %s54
      %57 = dma.hbm_to_vmem [thread:$0]  %s3, 16, %s55, [#allocation9]
    $region17: #{tpu_custom_call.1} parent=1 // pred_fallthru
      _
    // Predicated region
    $region18: #{tpu_custom_call.1} parent=1 // pred_check
      _
    $region19: #{tpu_custom_call.1} parent=1 // pred_check_branch
      %59 = sbr.rel (0) target = $region21
    $region20: #{tpu_custom_call.1} parent=1 // pred_region
      %s61 = ssub.s32 128, 128
      %62 = vsyncadd [#allocation9], %s61
      %s63 = sshll.u32 [#allocation10], 4
      %s64 = int_to_ptr.vmem [resolvable:$true] %s63
      %69 = dma.hbm_to_vmem [thread:$0]  %s4, 128, %s64, [#allocation9], 64, 64, 4
    $region21: #{tpu_custom_call.1} parent=1 // pred_fallthru
      _
    // Predicated region
    $region22: #{tpu_custom_call.1} parent=1 // pred_check
      _
    $region23: #{tpu_custom_call.1} parent=1 // pred_check_branch
      %71 = sbr.rel (0) target = $region25
    $region24: #{tpu_custom_call.1} parent=1 // pred_region
      %s73 = ssub.s32 16, 16
      %74 = vsyncadd [#allocation12], %s73
      %s76 = sshll.u32 [#allocation11], 4
      %s77 = int_to_ptr.vmem [resolvable:$true] %s76
      %79 = dma.hbm_to_vmem [thread:$0]  %s5, 16, %s77, [#allocation12]
    $region25: #{tpu_custom_call.1} parent=1 // pred_fallthru
      _
    // Predicated region
    $region26: #{tpu_custom_call.1} parent=1 // pred_check
      _
    $region27: #{tpu_custom_call.1} parent=1 // pred_check_branch
      %81 = sbr.rel (0) target = $region29
    $region28: #{tpu_custom_call.1} parent=1 // pred_region
      _
    $region29: #{tpu_custom_call.1} parent=1 // pred_fallthru
      _
    // Predicated region
    $region30: #{tpu_custom_call.1} parent=1 // pred_check
      _
    $region31: #{tpu_custom_call.1} parent=1 // pred_check_branch
      %83 = sbr.rel (0) target = $region33
    $region32: #{tpu_custom_call.1} parent=1 // pred_region
      %s85 = ssub.s32 32, 32
      %86 = vsyncadd [#allocation12], %s85
      %s87 = sshll.u32 [#allocation13], 4
      %s88 = int_to_ptr.vmem [resolvable:$true] %s87
      %93 = dma.hbm_to_vmem [thread:$0]  %s7, 32, %s88, [#allocation12], 16, 16, 1
    $region33: #{tpu_custom_call.1} parent=1 // pred_fallthru
      _
    // Predicated region
    $region34: #{tpu_custom_call.1} parent=1 // pred_check
      _
    $region35: #{tpu_custom_call.1} parent=1 // pred_check_branch
      %95 = sbr.rel (0) target = $region37
    $region36: #{tpu_custom_call.1} parent=1 // pred_region
      %s97 = ssub.s32 512, 512
      %98 = vsyncadd [#allocation15], %s97
      %s99 = sshll.u32 [#allocation14], 4
      %s100 = int_to_ptr.vmem [resolvable:$true] %s99
      %105 = dma.hbm_to_vmem [thread:$0]  %s8, 512, %s100, [#allocation15], 128, 128, 8
    $region37: #{tpu_custom_call.1} parent=1 // pred_fallthru
      _
    // Predicated region
    $region38: #{tpu_custom_call.1} parent=1 // pred_check
      _
    $region39: #{tpu_custom_call.1} parent=1 // pred_check_branch
      %107 = sbr.rel (0) target = $region41
    $region40: #{tpu_custom_call.1} parent=1 // pred_region
      %s109 = ssub.s32 32, 32
      %110 = vsyncadd [#allocation15], %s109
      %s112 = sshll.u32 [#allocation16], 4
      %s113 = int_to_ptr.vmem [resolvable:$true] %s112
      %115 = dma.hbm_to_vmem [thread:$0]  %s9, 32, %s113, [#allocation15]
    $region41: #{tpu_custom_call.1} parent=1 // pred_fallthru
      _
    // Predicated region
    $region42: #{tpu_custom_call.1} parent=1 // pred_check
      _
    $region43: #{tpu_custom_call.1} parent=1 // pred_check_branch
      %117 = sbr.rel (0) target = $region45
    $region44: #{tpu_custom_call.1} parent=1 // pred_region
      %s119 = ssub.s32 128, 128
      %120 = vsyncadd [#allocation18], %s119
      %s122 = sshll.u32 [#allocation17], 4
      %s123 = int_to_ptr.vmem [resolvable:$true] %s122
      %125 = dma.hbm_to_vmem [thread:$0]  %s11, 128, %s123, [#allocation18]
    $region45: #{tpu_custom_call.1} parent=1 // pred_fallthru
      _
    // Predicated region
    $region46: #{tpu_custom_call.1} parent=1 // pred_check
      _
    $region47: #{tpu_custom_call.1} parent=1 // pred_check_branch
      %127 = sbr.rel (0) target = $region49
    $region48: #{tpu_custom_call.1} parent=1 // pred_region
      _
    $region49: #{tpu_custom_call.1} parent=1 // pred_fallthru
      _
    // Predicated region
    $region50: #{tpu_custom_call.1} parent=1 // pred_check
      _
    $region51: #{tpu_custom_call.1} parent=1 // pred_check_branch
      %129 = sbr.rel (0) target = $region53
    $region52: #{tpu_custom_call.1} parent=1 // pred_region
      %s131 = ssub.s32 8192, 8192
      %132 = vsyncadd [#allocation18], %s131
      %s133 = sshll.u32 [#allocation19], 4
      %s134 = int_to_ptr.vmem [resolvable:$true] %s133
      %139 = dma.hbm_to_vmem [thread:$0]  %s14, 8192, %s134, [#allocation18], 128, 128, 8
    $region53: #{tpu_custom_call.1} parent=1 // pred_fallthru
      _
    // Predicated region
    $region54: #{tpu_custom_call.1} parent=1 // pred_check
      _
    $region55: #{tpu_custom_call.1} parent=1 // pred_check_branch
      %141 = sbr.rel (0) target = $region57
    $region56: #{tpu_custom_call.1} parent=1 // pred_region
      _
    $region57: #{tpu_custom_call.1} parent=1 // pred_fallthru
      _
    // Predicated region
    $region58: #{tpu_custom_call.1} parent=1 // pred_check
      _
    $region59: #{tpu_custom_call.1} parent=1 // pred_check_branch
      %143 = sbr.rel (0) target = $region61
    $region60: #{tpu_custom_call.1} parent=1 // pred_region
      _
    $region61: #{tpu_custom_call.1} parent=1 // pred_fallthru
      _
    // Predicated region
    $region62: #{tpu_custom_call.1} parent=1 // pred_check
      _
    $region63: #{tpu_custom_call.1} parent=1 // pred_check_branch
      %145 = sbr.rel (0) target = $region65
    $region64: #{tpu_custom_call.1} parent=1 // pred_region
      _
    $region65: #{tpu_custom_call.1} parent=1 // pred_fallthru
      _
    // Predicated region
    $region66: #{tpu_custom_call.1} parent=1 // pred_check
      _
    $region67: #{tpu_custom_call.1} parent=1 // pred_check_branch
      %147 = sbr.rel (0) target = $region69
    $region68: #{tpu_custom_call.1} parent=1 // pred_region
      %s149 = ssub.s32 2048, 2048
      %150 = vsyncadd [#allocation21], %s149
      %s151 = sshll.u32 [#allocation20], 4
      %s152 = int_to_ptr.vmem [resolvable:$true] %s151
      %157 = dma.hbm_to_vmem [thread:$0]  %s18, 2048, %s152, [#allocation21], 64, 64, 4
    $region69: #{tpu_custom_call.1} parent=1 // pred_fallthru
      _
    // Predicated region
    $region70: #{tpu_custom_call.1} parent=1 // pred_check
      _
    $region71: #{tpu_custom_call.1} parent=1 // pred_check_branch
      %159 = sbr.rel (0) target = $region73
    $region72: #{tpu_custom_call.1} parent=1 // pred_region
      _
    $region73: #{tpu_custom_call.1} parent=1 // pred_fallthru
      _
    // Predicated region
    $region74: #{tpu_custom_call.1} parent=1 // pred_check
      _
    $region75: #{tpu_custom_call.1} parent=1 // pred_check_branch
      %161 = sbr.rel (0) target = $region77
    $region76: #{tpu_custom_call.1} parent=1 // pred_region
      %162 = dma.done [#allocation6], 128
    $region77: #{tpu_custom_call.1} parent=1 // pred_fallthru
      _
    // Predicated region
    $region78: #{tpu_custom_call.1} parent=1 // pred_check
      _
    $region79: #{tpu_custom_call.1} parent=1 // pred_check_branch
      %164 = sbr.rel (0) target = $region81
    $region80: #{tpu_custom_call.1} parent=1 // pred_region
      %165 = dma.done [#allocation9], 16
    $region81: #{tpu_custom_call.1} parent=1 // pred_fallthru
      _
    // Predicated region
    $region82: #{tpu_custom_call.1} parent=1 // pred_check
      _
    $region83: #{tpu_custom_call.1} parent=1 // pred_check_branch
      %167 = sbr.rel (0) target = $region85
    $region84: #{tpu_custom_call.1} parent=1 // pred_region
      %168 = dma.done [#allocation9], 128
    $region85: #{tpu_custom_call.1} parent=1 // pred_fallthru
      _
    // Predicated region
    $region86: #{tpu_custom_call.1} parent=1 // pred_check
      _
    $region87: #{tpu_custom_call.1} parent=1 // pred_check_branch
      %170 = sbr.rel (0) target = $region89
    $region88: #{tpu_custom_call.1} parent=1 // pred_region
      %171 = dma.done [#allocation12], 16
    $region89: #{tpu_custom_call.1} parent=1 // pred_fallthru
      _
    // Predicated region
    $region90: #{tpu_custom_call.1} parent=1 // pred_check
      _
    $region91: #{tpu_custom_call.1} parent=1 // pred_check_branch
      %173 = sbr.rel (0) target = $region93
    $region92: #{tpu_custom_call.1} parent=1 // pred_region
      %174 = dma.done [#allocation12], 32
    $region93: #{tpu_custom_call.1} parent=1 // pred_fallthru
      _
    // Predicated region
    $region94: #{tpu_custom_call.1} parent=1 // pred_check
      _
    $region95: #{tpu_custom_call.1} parent=1 // pred_check_branch
      %176 = sbr.rel (0) target = $region97
    $region96: #{tpu_custom_call.1} parent=1 // pred_region
      %177 = dma.done [#allocation15], 512
    $region97: #{tpu_custom_call.1} parent=1 // pred_fallthru
      _
    // Predicated region
    $region98: #{tpu_custom_call.1} parent=1 // pred_check
      _
    $region99: #{tpu_custom_call.1} parent=1 // pred_check_branch
      %179 = sbr.rel (0) target = $region101
    $region100: #{tpu_custom_call.1} parent=1 // pred_region
      %180 = dma.done [#allocation15], 32
    $region101: #{tpu_custom_call.1} parent=1 // pred_fallthru
      _
    // Predicated region
    $region102: #{tpu_custom_call.1} parent=1 // pred_check
      _
    $region103: #{tpu_custom_call.1} parent=1 // pred_check_branch
      %182 = sbr.rel (0) target = $region105
    $region104: #{tpu_custom_call.1} parent=1 // pred_region
      %183 = dma.done [#allocation18], 128
    $region105: #{tpu_custom_call.1} parent=1 // pred_fallthru
      _
    // Predicated region
    $region106: #{tpu_custom_call.1} parent=1 // pred_check
      _
    $region107: #{tpu_custom_call.1} parent=1 // pred_check_branch
      %185 = sbr.rel (0) target = $region109
    $region108: #{tpu_custom_call.1} parent=1 // pred_region
      %186 = dma.done [#allocation18], 8192
    $region109: #{tpu_custom_call.1} parent=1 // pred_fallthru
      _
    // Predicated region
    $region110: #{tpu_custom_call.1} parent=1 // pred_check
      _
    $region111: #{tpu_custom_call.1} parent=1 // pred_check_branch
      %188 = sbr.rel (0) target = $region113
    $region112: #{tpu_custom_call.1} parent=1 // pred_region
      %189 = dma.done [#allocation21], 2048
    $region113: #{tpu_custom_call.1} parent=1 // pred_fallthru
      _
    %p192 = scmp.lt.u32.totalorder 4, 8
    %p193 = pneg %p192
    // Predicated region
    $region114: #{tpu_custom_call.1} parent=1 // pred_check
      _
    $region115: #{tpu_custom_call.1} parent=1 // pred_check_branch
      %195 = sbr.rel (%p192) target = $region117
    $region116: #{tpu_custom_call.1} parent=1 // pred_region
      %s336 = sand.u32 4, 7
      %p337 = scmp.eq.s32.totalorder %s336, 0
      %p338 = pneg %p337
      // Predicated region
      $region129: #{tpu_custom_call.1} parent=116 // pred_check
        _
      $region130: #{tpu_custom_call.1} parent=116 // pred_check_branch
        %340 = sbr.rel (%p337) target = $region132
      $region131: #{tpu_custom_call.1} parent=116 // pred_region
        %s341 = sand.u32 4, 7
        %s342 = ssub.s32 4, %s341
        %s343 = scalar_lea.vmem %s10, %s342
        %s344 = ssub.s32 4, %s341
        %s345 = scalar_lea.vmem [#allocation2], %s344
        loop: start=0, step=1, limit=1
        $region133: #{tpu_custom_call.1} parent=131 // loop_pre_header
          _
        $region134: #{tpu_custom_call.1} parent=131 // loop_header
          %s347 = sphi 0, %s351
          %p348 = scmp.ge.s32.totalorder %s347, 1
          %s352 = sphi %s10, %s10
          %s353 = sphi [#allocation2], [#allocation2]
        $region135: #{tpu_custom_call.1} parent=131 // loop_header_branch
          %350 = sbr.rel (%p348) target = $region139
        $region136: #{tpu_custom_call.1} parent=131 // loop_body
          _
        $region137: #{tpu_custom_call.1} parent=131 // loop_footer
          %s351 = sadd.s32 1, %s347
        $region138: #{tpu_custom_call.1} parent=131 // loop_footer_branch
          %346 = sbr.rel target = $region134
        $region139: #{tpu_custom_call.1} parent=131 // loop_exit
          _
        %s354 = sshllo.u32 0, %s341
        loop: start=0, step=1, limit=1
        $region140: #{tpu_custom_call.1} parent=131 // loop_pre_header
          _
        $region141: #{tpu_custom_call.1} parent=131 // loop_header
          %s356 = sphi 0, %s360
          %p357 = scmp.ge.s32.totalorder %s356, 1
          %s361 = sphi %s343, %s343
          %s362 = sphi %s345, %s345
        $region142: #{tpu_custom_call.1} parent=131 // loop_header_branch
          %359 = sbr.rel (%p357) target = $region146
        $region143: #{tpu_custom_call.1} parent=131 // loop_body
          %v363 = vld [vmem:[%s361] sm:%s354]
          %364 = vst [vmem:[%s362] sm:%s354] %v363
          %v365 = vld [vmem:[%s361 + $0x20] sm:%s354]
          %366 = vst [vmem:[%s362 + $0x4] sm:%s354] %v365
          %v367 = vld [vmem:[%s361 + $0x4] sm:%s354]
          %368 = vst [vmem:[%s362 + $0x8] sm:%s354] %v367
          %v369 = vld [vmem:[%s361 + $0x24] sm:%s354]
          %370 = vst [vmem:[%s362 + $0xc] sm:%s354] %v369
          %v371 = vld [vmem:[%s361 + $0x8] sm:%s354]
          %372 = vst [vmem:[%s362 + $0x10] sm:%s354] %v371
          %v373 = vld [vmem:[%s361 + $0x28] sm:%s354]
          %374 = vst [vmem:[%s362 + $0x14] sm:%s354] %v373
          %v375 = vld [vmem:[%s361 + $0xc] sm:%s354]
          %376 = vst [vmem:[%s362 + $0x18] sm:%s354] %v375
          %v377 = vld [vmem:[%s361 + $0x2c] sm:%s354]
          %378 = vst [vmem:[%s362 + $0x1c] sm:%s354] %v377
          %v379 = vld [vmem:[%s361 + $0x10] sm:%s354]
          %380 = vst [vmem:[%s362 + $0x20] sm:%s354] %v379
          %v381 = vld [vmem:[%s361 + $0x30] sm:%s354]
          %382 = vst [vmem:[%s362 + $0x24] sm:%s354] %v381
          %v383 = vld [vmem:[%s361 + $0x14] sm:%s354]
          %384 = vst [vmem:[%s362 + $0x28] sm:%s354] %v383
          %v385 = vld [vmem:[%s361 + $0x34] sm:%s354]
          %386 = vst [vmem:[%s362 + $0x2c] sm:%s354] %v385
          %v387 = vld [vmem:[%s361 + $0x18] sm:%s354]
          %388 = vst [vmem:[%s362 + $0x30] sm:%s354] %v387
          %v389 = vld [vmem:[%s361 + $0x38] sm:%s354]
          %390 = vst [vmem:[%s362 + $0x34] sm:%s354] %v389
          %v391 = vld [vmem:[%s361 + $0x1c] sm:%s354]
          %392 = vst [vmem:[%s362 + $0x38] sm:%s354] %v391
          %v393 = vld [vmem:[%s361 + $0x3c] sm:%s354]
          %394 = vst [vmem:[%s362 + $0x3c] sm:%s354] %v393
          %v395 = vld [vmem:[%s361 + $0x40] sm:%s354]
          %396 = vst [vmem:[%s362 + $0x40] sm:%s354] %v395
          %v397 = vld [vmem:[%s361 + $0x60] sm:%s354]
          %398 = vst [vmem:[%s362 + $0x44] sm:%s354] %v397
          %v399 = vld [vmem:[%s361 + $0x44] sm:%s354]
          %400 = vst [vmem:[%s362 + $0x48] sm:%s354] %v399
          %v401 = vld [vmem:[%s361 + $0x64] sm:%s354]
          %402 = vst [vmem:[%s362 + $0x4c] sm:%s354] %v401
          %v403 = vld [vmem:[%s361 + $0x48] sm:%s354]
          %404 = vst [vmem:[%s362 + $0x50] sm:%s354] %v403
          %v405 = vld [vmem:[%s361 + $0x68] sm:%s354]
          %406 = vst [vmem:[%s362 + $0x54] sm:%s354] %v405
          %v407 = vld [vmem:[%s361 + $0x4c] sm:%s354]
          %408 = vst [vmem:[%s362 + $0x58] sm:%s354] %v407
          %v409 = vld [vmem:[%s361 + $0x6c] sm:%s354]
          %410 = vst [vmem:[%s362 + $0x5c] sm:%s354] %v409
          %v411 = vld [vmem:[%s361 + $0x50] sm:%s354]
          %412 = vst [vmem:[%s362 + $0x60] sm:%s354] %v411
          %v413 = vld [vmem:[%s361 + $0x70] sm:%s354]
          %414 = vst [vmem:[%s362 + $0x64] sm:%s354] %v413
          %v415 = vld [vmem:[%s361 + $0x54] sm:%s354]
          %416 = vst [vmem:[%s362 + $0x68] sm:%s354] %v415
          %v417 = vld [vmem:[%s361 + $0x74] sm:%s354]
          %418 = vst [vmem:[%s362 + $0x6c] sm:%s354] %v417
          %v419 = vld [vmem:[%s361 + $0x58] sm:%s354]
          %420 = vst [vmem:[%s362 + $0x70] sm:%s354] %v419
          %v421 = vld [vmem:[%s361 + $0x78] sm:%s354]
          %422 = vst [vmem:[%s362 + $0x74] sm:%s354] %v421
          %v423 = vld [vmem:[%s361 + $0x5c] sm:%s354]
          %424 = vst [vmem:[%s362 + $0x78] sm:%s354] %v423
          %v425 = vld [vmem:[%s361 + $0x7c] sm:%s354]
          %426 = vst [vmem:[%s362 + $0x7c] sm:%s354] %v425
          %v427 = vld [vmem:[%s361 + $0x80] sm:%s354]
          %428 = vst [vmem:[%s362 + $0x80] sm:%s354] %v427
          %v429 = vld [vmem:[%s361 + $0xa0] sm:%s354]
          %430 = vst [vmem:[%s362 + $0x84] sm:%s354] %v429
          %v431 = vld [vmem:[%s361 + $0x84] sm:%s354]
          %432 = vst [vmem:[%s362 + $0x88] sm:%s354] %v431
          %v433 = vld [vmem:[%s361 + $0xa4] sm:%s354]
          %434 = vst [vmem:[%s362 + $0x8c] sm:%s354] %v433
          %v435 = vld [vmem:[%s361 + $0x88] sm:%s354]
          %436 = vst [vmem:[%s362 + $0x90] sm:%s354] %v435
          %v437 = vld [vmem:[%s361 + $0xa8] sm:%s354]
          %438 = vst [vmem:[%s362 + $0x94] sm:%s354] %v437
          %v439 = vld [vmem:[%s361 + $0x8c] sm:%s354]
          %440 = vst [vmem:[%s362 + $0x98] sm:%s354] %v439
          %v441 = vld [vmem:[%s361 + $0xac] sm:%s354]
          %442 = vst [vmem:[%s362 + $0x9c] sm:%s354] %v441
          %v443 = vld [vmem:[%s361 + $0x90] sm:%s354]
          %444 = vst [vmem:[%s362 + $0xa0] sm:%s354] %v443
          %v445 = vld [vmem:[%s361 + $0xb0] sm:%s354]
          %446 = vst [vmem:[%s362 + $0xa4] sm:%s354] %v445
          %v447 = vld [vmem:[%s361 + $0x94] sm:%s354]
          %448 = vst [vmem:[%s362 + $0xa8] sm:%s354] %v447
          %v449 = vld [vmem:[%s361 + $0xb4] sm:%s354]
          %450 = vst [vmem:[%s362 + $0xac] sm:%s354] %v449
          %v451 = vld [vmem:[%s361 + $0x98] sm:%s354]
          %452 = vst [vmem:[%s362 + $0xb0] sm:%s354] %v451
          %v453 = vld [vmem:[%s361 + $0xb8] sm:%s354]
          %454 = vst [vmem:[%s362 + $0xb4] sm:%s354] %v453
          %v455 = vld [vmem:[%s361 + $0x9c] sm:%s354]
          %456 = vst [vmem:[%s362 + $0xb8] sm:%s354] %v455
          %v457 = vld [vmem:[%s361 + $0xbc] sm:%s354]
          %458 = vst [vmem:[%s362 + $0xbc] sm:%s354] %v457
          %v459 = vld [vmem:[%s361 + $0xc0] sm:%s354]
          %460 = vst [vmem:[%s362 + $0xc0] sm:%s354] %v459
          %v461 = vld [vmem:[%s361 + $0xe0] sm:%s354]
          %462 = vst [vmem:[%s362 + $0xc4] sm:%s354] %v461
          %v463 = vld [vmem:[%s361 + $0xc4] sm:%s354]
          %464 = vst [vmem:[%s362 + $0xc8] sm:%s354] %v463
          %v465 = vld [vmem:[%s361 + $0xe4] sm:%s354]
          %466 = vst [vmem:[%s362 + $0xcc] sm:%s354] %v465
          %v467 = vld [vmem:[%s361 + $0xc8] sm:%s354]
          %468 = vst [vmem:[%s362 + $0xd0] sm:%s354] %v467
          %v469 = vld [vmem:[%s361 + $0xe8] sm:%s354]
          %470 = vst [vmem:[%s362 + $0xd4] sm:%s354] %v469
          %v471 = vld [vmem:[%s361 + $0xcc] sm:%s354]
          %472 = vst [vmem:[%s362 + $0xd8] sm:%s354] %v471
          %v473 = vld [vmem:[%s361 + $0xec] sm:%s354]
          %474 = vst [vmem:[%s362 + $0xdc] sm:%s354] %v473
          %v475 = vld [vmem:[%s361 + $0xd0] sm:%s354]
          %476 = vst [vmem:[%s362 + $0xe0] sm:%s354] %v475
          %v477 = vld [vmem:[%s361 + $0xf0] sm:%s354]
          %478 = vst [vmem:[%s362 + $0xe4] sm:%s354] %v477
          %v479 = vld [vmem:[%s361 + $0xd4] sm:%s354]
          %480 = vst [vmem:[%s362 + $0xe8] sm:%s354] %v479
          %v481 = vld [vmem:[%s361 + $0xf4] sm:%s354]
          %482 = vst [vmem:[%s362 + $0xec] sm:%s354] %v481
          %v483 = vld [vmem:[%s361 + $0xd8] sm:%s354]
          %484 = vst [vmem:[%s362 + $0xf0] sm:%s354] %v483
          %v485 = vld [vmem:[%s361 + $0xf8] sm:%s354]
          %486 = vst [vmem:[%s362 + $0xf4] sm:%s354] %v485
          %v487 = vld [vmem:[%s361 + $0xdc] sm:%s354]
          %488 = vst [vmem:[%s362 + $0xf8] sm:%s354] %v487
          %v489 = vld [vmem:[%s361 + $0xfc] sm:%s354]
          %490 = vst [vmem:[%s362 + $0xfc] sm:%s354] %v489
        $region144: #{tpu_custom_call.1} parent=131 // loop_footer
          %s360 = sadd.s32 1, %s356
        $region145: #{tpu_custom_call.1} parent=131 // loop_footer_branch
          %355 = sbr.rel target = $region141
        $region146: #{tpu_custom_call.1} parent=131 // loop_exit
          _
      $region132: #{tpu_custom_call.1} parent=116 // pred_fallthru
        _
    $region117: #{tpu_custom_call.1} parent=1 // pred_fallthru
      _
    // Predicated region
    $region118: #{tpu_custom_call.1} parent=1 // pred_check
      %p196 = pneg %p192
    $region119: #{tpu_custom_call.1} parent=1 // pred_check_branch
      %198 = sbr.rel (%p196) target = $region121
    $region120: #{tpu_custom_call.1} parent=1 // pred_region
      %s199 = sshllo.u32 0, 4
      loop: start=0, step=1, limit=1
      $region122: #{tpu_custom_call.1} parent=120 // loop_pre_header
        _
      $region123: #{tpu_custom_call.1} parent=120 // loop_header
        %s201 = sphi 0, %s205
        %p202 = scmp.ge.s32.totalorder %s201, 1
        %s206 = sphi %s10, %s10
        %s207 = sphi [#allocation2], [#allocation2]
      $region124: #{tpu_custom_call.1} parent=120 // loop_header_branch
        %204 = sbr.rel (%p202) target = $region128
      $region125: #{tpu_custom_call.1} parent=120 // loop_body
        %v208 = vld [vmem:[%s206] sm:%s199]
        %209 = vst [vmem:[%s207] sm:%s199] %v208
        %v210 = vld [vmem:[%s206 + $0x20] sm:%s199]
        %211 = vst [vmem:[%s207 + $0x4] sm:%s199] %v210
        %v212 = vld [vmem:[%s206 + $0x4] sm:%s199]
        %213 = vst [vmem:[%s207 + $0x8] sm:%s199] %v212
        %v214 = vld [vmem:[%s206 + $0x24] sm:%s199]
        %215 = vst [vmem:[%s207 + $0xc] sm:%s199] %v214
        %v216 = vld [vmem:[%s206 + $0x8] sm:%s199]
        %217 = vst [vmem:[%s207 + $0x10] sm:%s199] %v216
        %v218 = vld [vmem:[%s206 + $0x28] sm:%s199]
        %219 = vst [vmem:[%s207 + $0x14] sm:%s199] %v218
        %v220 = vld [vmem:[%s206 + $0xc] sm:%s199]
        %221 = vst [vmem:[%s207 + $0x18] sm:%s199] %v220
        %v222 = vld [vmem:[%s206 + $0x2c] sm:%s199]
        %223 = vst [vmem:[%s207 + $0x1c] sm:%s199] %v222
        %v224 = vld [vmem:[%s206 + $0x10] sm:%s199]
        %225 = vst [vmem:[%s207 + $0x20] sm:%s199] %v224
        %v226 = vld [vmem:[%s206 + $0x30] sm:%s199]
        %227 = vst [vmem:[%s207 + $0x24] sm:%s199] %v226
        %v228 = vld [vmem:[%s206 + $0x14] sm:%s199]
        %229 = vst [vmem:[%s207 + $0x28] sm:%s199] %v228
        %v230 = vld [vmem:[%s206 + $0x34] sm:%s199]
        %231 = vst [vmem:[%s207 + $0x2c] sm:%s199] %v230
        %v232 = vld [vmem:[%s206 + $0x18] sm:%s199]
        %233 = vst [vmem:[%s207 + $0x30] sm:%s199] %v232
        %v234 = vld [vmem:[%s206 + $0x38] sm:%s199]
        %235 = vst [vmem:[%s207 + $0x34] sm:%s199] %v234
        %v236 = vld [vmem:[%s206 + $0x1c] sm:%s199]
        %237 = vst [vmem:[%s207 + $0x38] sm:%s199] %v236
        %v238 = vld [vmem:[%s206 + $0x3c] sm:%s199]
        %239 = vst [vmem:[%s207 + $0x3c] sm:%s199] %v238
        %v240 = vld [vmem:[%s206 + $0x40] sm:%s199]
        %241 = vst [vmem:[%s207 + $0x40] sm:%s199] %v240
        %v242 = vld [vmem:[%s206 + $0x60] sm:%s199]
        %243 = vst [vmem:[%s207 + $0x44] sm:%s199] %v242
        %v244 = vld [vmem:[%s206 + $0x44] sm:%s199]
        %245 = vst [vmem:[%s207 + $0x48] sm:%s199] %v244
        %v246 = vld [vmem:[%s206 + $0x64] sm:%s199]
        %247 = vst [vmem:[%s207 + $0x4c] sm:%s199] %v246
        %v248 = vld [vmem:[%s206 + $0x48] sm:%s199]
        %249 = vst [vmem:[%s207 + $0x50] sm:%s199] %v248
        %v250 = vld [vmem:[%s206 + $0x68] sm:%s199]
        %251 = vst [vmem:[%s207 + $0x54] sm:%s199] %v250
        %v252 = vld [vmem:[%s206 + $0x4c] sm:%s199]
        %253 = vst [vmem:[%s207 + $0x58] sm:%s199] %v252
        %v254 = vld [vmem:[%s206 + $0x6c] sm:%s199]
        %255 = vst [vmem:[%s207 + $0x5c] sm:%s199] %v254
        %v256 = vld [vmem:[%s206 + $0x50] sm:%s199]
        %257 = vst [vmem:[%s207 + $0x60] sm:%s199] %v256
        %v258 = vld [vmem:[%s206 + $0x70] sm:%s199]
        %259 = vst [vmem:[%s207 + $0x64] sm:%s199] %v258
        %v260 = vld [vmem:[%s206 + $0x54] sm:%s199]
        %261 = vst [vmem:[%s207 + $0x68] sm:%s199] %v260
        %v262 = vld [vmem:[%s206 + $0x74] sm:%s199]
        %263 = vst [vmem:[%s207 + $0x6c] sm:%s199] %v262
        %v264 = vld [vmem:[%s206 + $0x58] sm:%s199]
        %265 = vst [vmem:[%s207 + $0x70] sm:%s199] %v264
        %v266 = vld [vmem:[%s206 + $0x78] sm:%s199]
        %267 = vst [vmem:[%s207 + $0x74] sm:%s199] %v266
        %v268 = vld [vmem:[%s206 + $0x5c] sm:%s199]
        %269 = vst [vmem:[%s207 + $0x78] sm:%s199] %v268
        %v270 = vld [vmem:[%s206 + $0x7c] sm:%s199]
        %271 = vst [vmem:[%s207 + $0x7c] sm:%s199] %v270
        %v272 = vld [vmem:[%s206 + $0x80] sm:%s199]
        %273 = vst [vmem:[%s207 + $0x80] sm:%s199] %v272
        %v274 = vld [vmem:[%s206 + $0xa0] sm:%s199]
        %275 = vst [vmem:[%s207 + $0x84] sm:%s199] %v274
        %v276 = vld [vmem:[%s206 + $0x84] sm:%s199]
        %277 = vst [vmem:[%s207 + $0x88] sm:%s199] %v276
        %v278 = vld [vmem:[%s206 + $0xa4] sm:%s199]
        %279 = vst [vmem:[%s207 + $0x8c] sm:%s199] %v278
        %v280 = vld [vmem:[%s206 + $0x88] sm:%s199]
        %281 = vst [vmem:[%s207 + $0x90] sm:%s199] %v280
        %v282 = vld [vmem:[%s206 + $0xa8] sm:%s199]
        %283 = vst [vmem:[%s207 + $0x94] sm:%s199] %v282
        %v284 = vld [vmem:[%s206 + $0x8c] sm:%s199]
        %285 = vst [vmem:[%s207 + $0x98] sm:%s199] %v284
        %v286 = vld [vmem:[%s206 + $0xac] sm:%s199]
        %287 = vst [vmem:[%s207 + $0x9c] sm:%s199] %v286
        %v288 = vld [vmem:[%s206 + $0x90] sm:%s199]
        %289 = vst [vmem:[%s207 + $0xa0] sm:%s199] %v288
        %v290 = vld [vmem:[%s206 + $0xb0] sm:%s199]
        %291 = vst [vmem:[%s207 + $0xa4] sm:%s199] %v290
        %v292 = vld [vmem:[%s206 + $0x94] sm:%s199]
        %293 = vst [vmem:[%s207 + $0xa8] sm:%s199] %v292
        %v294 = vld [vmem:[%s206 + $0xb4] sm:%s199]
        %295 = vst [vmem:[%s207 + $0xac] sm:%s199] %v294
        %v296 = vld [vmem:[%s206 + $0x98] sm:%s199]
        %297 = vst [vmem:[%s207 + $0xb0] sm:%s199] %v296
        %v298 = vld [vmem:[%s206 + $0xb8] sm:%s199]
        %299 = vst [vmem:[%s207 + $0xb4] sm:%s199] %v298
        %v300 = vld [vmem:[%s206 + $0x9c] sm:%s199]
        %301 = vst [vmem:[%s207 + $0xb8] sm:%s199] %v300
        %v302 = vld [vmem:[%s206 + $0xbc] sm:%s199]
        %303 = vst [vmem:[%s207 + $0xbc] sm:%s199] %v302
        %v304 = vld [vmem:[%s206 + $0xc0] sm:%s199]
        %305 = vst [vmem:[%s207 + $0xc0] sm:%s199] %v304
        %v306 = vld [vmem:[%s206 + $0xe0] sm:%s199]
        %307 = vst [vmem:[%s207 + $0xc4] sm:%s199] %v306
        %v308 = vld [vmem:[%s206 + $0xc4] sm:%s199]
        %309 = vst [vmem:[%s207 + $0xc8] sm:%s199] %v308
        %v310 = vld [vmem:[%s206 + $0xe4] sm:%s199]
        %311 = vst [vmem:[%s207 + $0xcc] sm:%s199] %v310
        %v312 = vld [vmem:[%s206 + $0xc8] sm:%s199]
        %313 = vst [vmem:[%s207 + $0xd0] sm:%s199] %v312
        %v314 = vld [vmem:[%s206 + $0xe8] sm:%s199]
        %315 = vst [vmem:[%s207 + $0xd4] sm:%s199] %v314
        %v316 = vld [vmem:[%s206 + $0xcc] sm:%s199]
        %317 = vst [vmem:[%s207 + $0xd8] sm:%s199] %v316
        %v318 = vld [vmem:[%s206 + $0xec] sm:%s199]
        %319 = vst [vmem:[%s207 + $0xdc] sm:%s199] %v318
        %v320 = vld [vmem:[%s206 + $0xd0] sm:%s199]
        %321 = vst [vmem:[%s207 + $0xe0] sm:%s199] %v320
        %v322 = vld [vmem:[%s206 + $0xf0] sm:%s199]
        %323 = vst [vmem:[%s207 + $0xe4] sm:%s199] %v322
        %v324 = vld [vmem:[%s206 + $0xd4] sm:%s199]
        %325 = vst [vmem:[%s207 + $0xe8] sm:%s199] %v324
        %v326 = vld [vmem:[%s206 + $0xf4] sm:%s199]
        %327 = vst [vmem:[%s207 + $0xec] sm:%s199] %v326
        %v328 = vld [vmem:[%s206 + $0xd8] sm:%s199]
        %329 = vst [vmem:[%s207 + $0xf0] sm:%s199] %v328
        %v330 = vld [vmem:[%s206 + $0xf8] sm:%s199]
        %331 = vst [vmem:[%s207 + $0xf4] sm:%s199] %v330
        %v332 = vld [vmem:[%s206 + $0xdc] sm:%s199]
        %333 = vst [vmem:[%s207 + $0xf8] sm:%s199] %v332
        %v334 = vld [vmem:[%s206 + $0xfc] sm:%s199]
        %335 = vst [vmem:[%s207 + $0xfc] sm:%s199] %v334
      $region126: #{tpu_custom_call.1} parent=120 // loop_footer
        %s205 = sadd.s32 1, %s201
      $region127: #{tpu_custom_call.1} parent=120 // loop_footer_branch
        %200 = sbr.rel target = $region123
      $region128: #{tpu_custom_call.1} parent=120 // loop_exit
        _
    $region121: #{tpu_custom_call.1} parent=1 // pred_fallthru
      _
    // Predicated region
    $region147: #{tpu_custom_call.1} parent=1 // pred_check
      _
    $region148: #{tpu_custom_call.1} parent=1 // pred_check_branch
      %493 = sbr.rel (0) target = $region150
    $region149: #{tpu_custom_call.1} parent=1 // pred_region
      %494 = vsyncadd [#allocation4], 4096
    $region150: #{tpu_custom_call.1} parent=1 // pred_fallthru
      _
    %s495 = scalar_lea.sflag [#allocation4], 1
    %s497 = sshll.u32 1, 14
    %s498 = sxor.u32 4294967295, %s497
    %s500 = sld [smem:[#allocation0]]
    %s501 = sadd.s32 2, %s500
    %s503 = sshll.u32 7, 26
    %s504 = sxor.u32 4294967295, %s503
    %s505 = sand.u32 0, %s504
    %s506 = sshll.u32 %s501, 26
    %s507 = sor.u32 %s505, %s506
    %s508 = sshll.u32 [#allocation3], 4
    %s509 = int_to_ptr.vmem [resolvable:$true] %s508
    %512 = sst [smem:[#allocation25]] 256
    %s513 = scalar_lea.smem [#allocation25], 1
    %514 = sst [smem:[%s513]] 256
    %s515 = scalar_lea.smem [#allocation25], 2
    %516 = sst [smem:[%s515]] 2
    %s517 = scalar_lea.smem [#allocation25], 3
    %518 = sst [smem:[%s517]] 64
    %s519 = scalar_lea.smem [#allocation25], 4
    %520 = sst [smem:[%s519]] 128
    %s521 = scalar_lea.smem [#allocation25], 5
    %522 = sst [smem:[%s521]] 2
    %s523 = scalar_lea.smem [#allocation25], 6
    %524 = sst [smem:[%s523]] 128
    %s525 = scalar_lea.smem [#allocation25], 7
    %526 = sst [smem:[%s525]] 64
    %s527 = scalar_lea.smem [#allocation25], 8
    %528 = sst [smem:[%s527]] 4
    %530 = dma.general %s12, 16384, %s509, %s495, [#allocation24], [#allocation25], %s507, 0
    %v531 = vld [vmem:[%s0] sm:$0xf]
    %v532 = vld [vmem:[%s0 + $0x4] sm:$0xf]
    %v533 = vld [vmem:[#allocation5] sm:$0xf]
    %v534 = vld [vmem:[#allocation5 + $0x4] sm:$0xf]
    %v535 = vld [vmem:[#allocation10] sm:$0xf]
    %v536 = vld [vmem:[#allocation10 + $0x4] sm:$0xf]
    %v537 = vld [vmem:[#allocation11] sm:$0x1]
    %v539 = vlaneseq
    %v540 = vshrl.u32 %v539, 7
    %v541 = vsub.s32 0, %v540
    %v542 = vrot.slane %v537, %v541
    %v546 = vunpack.c.l.b16 %v531
    %v547 = vunpack.c.l.b16 %v532
    %v548 = vpack.c.b16 %v547, %v546
    %v551 = vunpack.c.l.b16 %v535
    %v552 = vunpack.c.l.b16 %v536
    %v553 = vpack.c.b16 %v552, %v551
    %vm555 = vcmask 130048
    %v557 = vsel %vm555, %v548, 0
    %559 = vmatprep.subr.bf16.mxu0 0
    %560 = vmatpush1.bf16.msra.mxu0 %v553
    %561 = vmatprep.subr.bf16.mxu0 0
    %562 = vmatpush1.bf16.msra.mxu0 0
    %563 = vmatprep.subr.bf16.mxu0 0
    %564 = vmatpush1.bf16.msra.mxu0 0
    %565 = vmatprep.subr.bf16.mxu0 0
    %566 = vmatpush1.bf16.msra.mxu0 0
    %567 = vmatprep.subr.bf16.mxu0 0
    %568 = vmatpush1.bf16.msra.mxu0 0
    %569 = vmatprep.subr.bf16.mxu0 0
    %570 = vmatpush1.bf16.msra.mxu0 0
    %571 = vmatprep.subr.bf16.mxu0 0
    %572 = vmatpush1.bf16.msra.mxu0 0
    %573 = vmatprep.subr.bf16.mxu0 0
    %574 = vmatpush1.bf16.msra.mxu0 0
    %575 = vmatprep.subr.bf16.mxu0 0
    %576 = vmatpush1.bf16.msra.mxu0 0
    %577 = vmatprep.subr.bf16.mxu0 0
    %578 = vmatpush1.bf16.msra.mxu0 0
    %579 = vmatprep.subr.bf16.mxu0 0
    %580 = vmatpush1.bf16.msra.mxu0 0
    %581 = vmatprep.subr.bf16.mxu0 0
    %582 = vmatpush1.bf16.msra.mxu0 0
    %583 = vmatprep.subr.bf16.mxu0 0
    %584 = vmatpush1.bf16.msra.mxu0 0
    %585 = vmatprep.subr.bf16.mxu0 0
    %586 = vmatpush1.bf16.msra.mxu0 0
    %587 = vmatprep.subr.bf16.mxu0 0
    %588 = vmatpush1.bf16.msra.mxu0 0
    %589 = vmatprep.subr.bf16.mxu0 0
    %590 = vmatpush1.bf16.msra.mxu0 0
    %591 = vmatprep.mubr.bf16.mxu0 0
    %592 = vmatmul.mubr.bf16.gmra.mrb[0].mxu0 %v557
    %v593 = vpop.f32.mrb[0].mxu0
    %v594 = vadd.f32 %v542, %v593
    %v595 = vpop.f32.mrb[0].mxu0
    %v596 = vpop.f32.mrb[0].mxu0
    %v597 = vadd.f32 %v542, %v596
    %v598 = vpop.f32.mrb[0].mxu0
    %599 = vdwg.mxu0
    %v600 = vpack.c.bf16 %v597, %v594
    %v603 = vunpack.c.l.b16 %v533
    %v604 = vunpack.c.l.b16 %v534
    %v605 = vpack.c.b16 %v604, %v603
    %v607 = vsel %vm555, %v605, 0
    %609 = vmatprep.subr.bf16.mxu0 0
    %610 = vmatpush1.bf16.msra.mxu0 %v600
    %611 = vmatprep.subr.bf16.mxu0 0
    %612 = vmatpush1.bf16.msra.mxu0 0
    %613 = vmatprep.subr.bf16.mxu0 0
    %614 = vmatpush1.bf16.msra.mxu0 0
    %615 = vmatprep.subr.bf16.mxu0 0
    %616 = vmatpush1.bf16.msra.mxu0 0
    %617 = vmatprep.subr.bf16.mxu0 0
    %618 = vmatpush1.bf16.msra.mxu0 0
    %619 = vmatprep.subr.bf16.mxu0 0
    %620 = vmatpush1.bf16.msra.mxu0 0
    %621 = vmatprep.subr.bf16.mxu0 0
    %622 = vmatpush1.bf16.msra.mxu0 0
    %623 = vmatprep.subr.bf16.mxu0 0
    %624 = vmatpush1.bf16.msra.mxu0 0
    %625 = vmatprep.subr.bf16.mxu0 0
    %626 = vmatpush1.bf16.msra.mxu0 0
    %627 = vmatprep.subr.bf16.mxu0 0
    %628 = vmatpush1.bf16.msra.mxu0 0
    %629 = vmatprep.subr.bf16.mxu0 0
    %630 = vmatpush1.bf16.msra.mxu0 0
    %631 = vmatprep.subr.bf16.mxu0 0
    %632 = vmatpush1.bf16.msra.mxu0 0
    %633 = vmatprep.subr.bf16.mxu0 0
    %634 = vmatpush1.bf16.msra.mxu0 0
    %635 = vmatprep.subr.bf16.mxu0 0
    %636 = vmatpush1.bf16.msra.mxu0 0
    %637 = vmatprep.subr.bf16.mxu0 0
    %638 = vmatpush1.bf16.msra.mxu0 0
    %639 = vmatprep.subr.bf16.mxu0 0
    %640 = vmatpush1.bf16.msra.mxu0 0
    %641 = vmatprep.mubr.bf16.mxu0 0
    %642 = vmatmul.mubr.bf16.gmra.mrb[0].mxu0 %v607
    %v643 = vpop.f32.mrb[0].mxu0
    %v644 = vadd.f32 0.0, %v643
    %v645 = vpop.f32.mrb[0].mxu0
    %v646 = vpop.f32.mrb[0].mxu0
    %v647 = vadd.f32 0.0, %v646
    %v648 = vpop.f32.mrb[0].mxu0
    %649 = vdwg.mxu0
    %652 = vrot.lane.b32.xlu0 %v644, 32
    %v653 = vpop.permute.xlu0 %652
    %654 = vrot.lane.b32.xlu0 %v647, 32
    %v655 = vpop.permute.xlu0 %654
    %v658 = vadd.f32 %v594, %v653
    %v659 = vadd.f32 %v597, %v655
    %vm660 = vcmp.gt.f32.partialorder %v658, 0.0
    %vm661 = vcmp.gt.f32.partialorder %v659, 0.0
    %v662 = vmul.f32 %v658, 0.01
    %v663 = vmul.f32 %v659, 0.01
    %v664 = vsel %vm660, %v658, %v662
    %v665 = vsel %vm661, %v659, %v663
    %v666 = vpack.c.bf16 %v665, %v664
    %v667 = vld [vmem:[%s6] sm:$0xf]
    %v668 = vld [vmem:[%s6 + $0x4] sm:$0xf]
    %v669 = vld [vmem:[%s6 + $0x8] sm:$0xf]
    %v670 = vld [vmem:[%s6 + $0xc] sm:$0xf]
    %v671 = vld [vmem:[#allocation13] sm:$0x1]
    %v673 = vlaneseq
    %v674 = vshrl.u32 %v673, 7
    %v675 = vsub.s32 0, %v674
    %v676 = vrot.slane %v671, %v675
    %679 = vrot.lane.b32.xlu0 %v666, 96
    %v680 = vpop.permute.xlu0 %679
    %v685 = vunpack.c.l.b16 %v667
    %v686 = vunpack.c.l.b16 %v668
    %v687 = vunpack.c.l.b16 %v669
    %v688 = vunpack.c.l.b16 %v670
    %v689 = vpack.c.b16 %v686, %v685
    %v690 = vpack.c.b16 %v688, %v687
    %vm693 = vcmask 261120
    %v695 = vsel %vm693, %v680, 0
    %697 = vmatprep.subr.bf16.mxu0 0
    %698 = vmatpush1.bf16.msra.mxu0 %v689
    %699 = vmatprep.subr.bf16.mxu0 0
    %700 = vmatpush1.bf16.msra.mxu0 %v690
    %701 = vmatprep.subr.bf16.mxu0 0
    %702 = vmatpush1.bf16.msra.mxu0 0
    %703 = vmatprep.subr.bf16.mxu0 0
    %704 = vmatpush1.bf16.msra.mxu0 0
    %705 = vmatprep.subr.bf16.mxu0 0
    %706 = vmatpush1.bf16.msra.mxu0 0
    %707 = vmatprep.subr.bf16.mxu0 0
    %708 = vmatpush1.bf16.msra.mxu0 0
    %709 = vmatprep.subr.bf16.mxu0 0
    %710 = vmatpush1.bf16.msra.mxu0 0
    %711 = vmatprep.subr.bf16.mxu0 0
    %712 = vmatpush1.bf16.msra.mxu0 0
    %713 = vmatprep.subr.bf16.mxu0 0
    %714 = vmatpush1.bf16.msra.mxu0 0
    %715 = vmatprep.subr.bf16.mxu0 0
    %716 = vmatpush1.bf16.msra.mxu0 0
    %717 = vmatprep.subr.bf16.mxu0 0
    %718 = vmatpush1.bf16.msra.mxu0 0
    %719 = vmatprep.subr.bf16.mxu0 0
    %720 = vmatpush1.bf16.msra.mxu0 0
    %721 = vmatprep.subr.bf16.mxu0 0
    %722 = vmatpush1.bf16.msra.mxu0 0
    %723 = vmatprep.subr.bf16.mxu0 0
    %724 = vmatpush1.bf16.msra.mxu0 0
    %725 = vmatprep.subr.bf16.mxu0 0
    %726 = vmatpush1.bf16.msra.mxu0 0
    %727 = vmatprep.subr.bf16.mxu0 0
    %728 = vmatpush1.bf16.msra.mxu0 0
    %729 = vmatprep.mubr.bf16.mxu0 0
    %730 = vmatmul.mubr.bf16.gmra.mrb[0].mxu0 %v695
    %v731 = vpop.f32.mrb[0].mxu0
    %v732 = vadd.f32 %v676, %v731
    %v733 = vpop.f32.mrb[0].mxu0
    %v734 = vpop.f32.mrb[0].mxu0
    %v735 = vadd.f32 %v676, %v734
    %v736 = vpop.f32.mrb[0].mxu0
    %737 = vdwg.mxu0
    %v738 = vpack.c.bf16 %v735, %v732
    %739 = vmatprep.subr.bf16.mxu0 0
    %740 = vmatpush1.bf16.msra.mxu0 %v738
    %741 = vmatprep.subr.bf16.mxu0 0
    %742 = vmatpush1.bf16.msra.mxu0 0
    %743 = vmatprep.subr.bf16.mxu0 0
    %744 = vmatpush1.bf16.msra.mxu0 0
    %745 = vmatprep.subr.bf16.mxu0 0
    %746 = vmatpush1.bf16.msra.mxu0 0
    %747 = vmatprep.subr.bf16.mxu0 0
    %748 = vmatpush1.bf16.msra.mxu0 0
    %749 = vmatprep.subr.bf16.mxu0 0
    %750 = vmatpush1.bf16.msra.mxu0 0
    %751 = vmatprep.subr.bf16.mxu0 0
    %752 = vmatpush1.bf16.msra.mxu0 0
    %753 = vmatprep.subr.bf16.mxu0 0
    %754 = vmatpush1.bf16.msra.mxu0 0
    %755 = vmatprep.subr.bf16.mxu0 0
    %756 = vmatpush1.bf16.msra.mxu0 0
    %757 = vmatprep.subr.bf16.mxu0 0
    %758 = vmatpush1.bf16.msra.mxu0 0
    %759 = vmatprep.subr.bf16.mxu0 0
    %760 = vmatpush1.bf16.msra.mxu0 0
    %761 = vmatprep.subr.bf16.mxu0 0
    %762 = vmatpush1.bf16.msra.mxu0 0
    %763 = vmatprep.subr.bf16.mxu0 0
    %764 = vmatpush1.bf16.msra.mxu0 0
    %765 = vmatprep.subr.bf16.mxu0 0
    %766 = vmatpush1.bf16.msra.mxu0 0
    %767 = vmatprep.subr.bf16.mxu0 0
    %768 = vmatpush1.bf16.msra.mxu0 0
    %769 = vmatprep.subr.bf16.mxu0 0
    %770 = vmatpush1.bf16.msra.mxu0 0
    %771 = vmatprep.mubr.bf16.mxu0 0
    %772 = vmatmul.mubr.bf16.gmra.mrb[0].mxu0 %v607
    %v773 = vpop.f32.mrb[0].mxu0
    %v774 = vadd.f32 0.0, %v773
    %v775 = vpop.f32.mrb[0].mxu0
    %v776 = vpop.f32.mrb[0].mxu0
    %v777 = vadd.f32 0.0, %v776
    %v778 = vpop.f32.mrb[0].mxu0
    %779 = vdwg.mxu0
    %782 = vrot.lane.b32.xlu0 %v774, 32
    %v783 = vpop.permute.xlu0 %782
    %784 = vrot.lane.b32.xlu0 %v777, 32
    %v785 = vpop.permute.xlu0 %784
    %v788 = vadd.f32 %v664, %v783
    %v789 = vadd.f32 %v665, %v785
    %vm790 = vcmp.gt.f32.partialorder %v788, 0.0
    %vm791 = vcmp.gt.f32.partialorder %v789, 0.0
    %v792 = vmul.f32 %v788, 0.01
    %v793 = vmul.f32 %v789, 0.01
    %v794 = vsel %vm790, %v788, %v792
    %v795 = vsel %vm791, %v789, %v793
    %v796 = vpack.c.bf16 %v795, %v794
    %s797 = scalar_lea.vmem %s6, 16
    %v798 = vld [vmem:[%s797] sm:$0xf]
    %v799 = vld [vmem:[%s797 + $0x4] sm:$0xf]
    %v800 = vld [vmem:[%s797 + $0x8] sm:$0xf]
    %v801 = vld [vmem:[%s797 + $0xc] sm:$0xf]
    %s802 = scalar_lea.vmem [#allocation13], 1
    %v803 = vld [vmem:[%s802] sm:$0x1]
    %v805 = vlaneseq
    %v806 = vshrl.u32 %v805, 7
    %v807 = vsub.s32 0, %v806
    %v808 = vrot.slane %v803, %v807
    %811 = vrot.lane.b32.xlu0 %v796, 96
    %v812 = vpop.permute.xlu0 %811
    %v817 = vunpack.c.l.b16 %v798
    %v818 = vunpack.c.l.b16 %v799
    %v819 = vunpack.c.l.b16 %v800
    %v820 = vunpack.c.l.b16 %v801
    %v821 = vpack.c.b16 %v818, %v817
    %v822 = vpack.c.b16 %v820, %v819
    %v826 = vsel %vm693, %v812, 0
    %828 = vmatprep.subr.bf16.mxu0 0
    %829 = vmatpush1.bf16.msra.mxu0 %v821
    %830 = vmatprep.subr.bf16.mxu0 0
    %831 = vmatpush1.bf16.msra.mxu0 %v822
    %832 = vmatprep.subr.bf16.mxu0 0
    %833 = vmatpush1.bf16.msra.mxu0 0
    %834 = vmatprep.subr.bf16.mxu0 0
    %835 = vmatpush1.bf16.msra.mxu0 0
    %836 = vmatprep.subr.bf16.mxu0 0
    %837 = vmatpush1.bf16.msra.mxu0 0
    %838 = vmatprep.subr.bf16.mxu0 0
    %839 = vmatpush1.bf16.msra.mxu0 0
    %840 = vmatprep.subr.bf16.mxu0 0
    %841 = vmatpush1.bf16.msra.mxu0 0
    %842 = vmatprep.subr.bf16.mxu0 0
    %843 = vmatpush1.bf16.msra.mxu0 0
    %844 = vmatprep.subr.bf16.mxu0 0
    %845 = vmatpush1.bf16.msra.mxu0 0
    %846 = vmatprep.subr.bf16.mxu0 0
    %847 = vmatpush1.bf16.msra.mxu0 0
    %848 = vmatprep.subr.bf16.mxu0 0
    %849 = vmatpush1.bf16.msra.mxu0 0
    %850 = vmatprep.subr.bf16.mxu0 0
    %851 = vmatpush1.bf16.msra.mxu0 0
    %852 = vmatprep.subr.bf16.mxu0 0
    %853 = vmatpush1.bf16.msra.mxu0 0
    %854 = vmatprep.subr.bf16.mxu0 0
    %855 = vmatpush1.bf16.msra.mxu0 0
    %856 = vmatprep.subr.bf16.mxu0 0
    %857 = vmatpush1.bf16.msra.mxu0 0
    %858 = vmatprep.subr.bf16.mxu0 0
    %859 = vmatpush1.bf16.msra.mxu0 0
    %860 = vmatprep.mubr.bf16.mxu0 0
    %861 = vmatmul.mubr.bf16.gmra.mrb[0].mxu0 %v826
    %v862 = vpop.f32.mrb[0].mxu0
    %v863 = vadd.f32 %v808, %v862
    %v864 = vpop.f32.mrb[0].mxu0
    %v865 = vpop.f32.mrb[0].mxu0
    %v866 = vadd.f32 %v808, %v865
    %v867 = vpop.f32.mrb[0].mxu0
    %868 = vdwg.mxu0
    %v869 = vpack.c.bf16 %v866, %v863
    %870 = vmatprep.subr.bf16.mxu0 0
    %871 = vmatpush1.bf16.msra.mxu0 %v869
    %872 = vmatprep.subr.bf16.mxu0 0
    %873 = vmatpush1.bf16.msra.mxu0 0
    %874 = vmatprep.subr.bf16.mxu0 0
    %875 = vmatpush1.bf16.msra.mxu0 0
    %876 = vmatprep.subr.bf16.mxu0 0
    %877 = vmatpush1.bf16.msra.mxu0 0
    %878 = vmatprep.subr.bf16.mxu0 0
    %879 = vmatpush1.bf16.msra.mxu0 0
    %880 = vmatprep.subr.bf16.mxu0 0
    %881 = vmatpush1.bf16.msra.mxu0 0
    %882 = vmatprep.subr.bf16.mxu0 0
    %883 = vmatpush1.bf16.msra.mxu0 0
    %884 = vmatprep.subr.bf16.mxu0 0
    %885 = vmatpush1.bf16.msra.mxu0 0
    %886 = vmatprep.subr.bf16.mxu0 0
    %887 = vmatpush1.bf16.msra.mxu0 0
    %888 = vmatprep.subr.bf16.mxu0 0
    %889 = vmatpush1.bf16.msra.mxu0 0
    %890 = vmatprep.subr.bf16.mxu0 0
    %891 = vmatpush1.bf16.msra.mxu0 0
    %892 = vmatprep.subr.bf16.mxu0 0
    %893 = vmatpush1.bf16.msra.mxu0 0
    %894 = vmatprep.subr.bf16.mxu0 0
    %895 = vmatpush1.bf16.msra.mxu0 0
    %896 = vmatprep.subr.bf16.mxu0 0
    %897 = vmatpush1.bf16.msra.mxu0 0
    %898 = vmatprep.subr.bf16.mxu0 0
    %899 = vmatpush1.bf16.msra.mxu0 0
    %900 = vmatprep.subr.bf16.mxu0 0
    %901 = vmatpush1.bf16.msra.mxu0 0
    %902 = vmatprep.mubr.bf16.mxu0 0
    %903 = vmatmul.mubr.bf16.gmra.mrb[0].mxu0 %v607
    %v904 = vpop.f32.mrb[0].mxu0
    %v905 = vadd.f32 0.0, %v904
    %v906 = vpop.f32.mrb[0].mxu0
    %v907 = vpop.f32.mrb[0].mxu0
    %v908 = vadd.f32 0.0, %v907
    %v909 = vpop.f32.mrb[0].mxu0
    %910 = vdwg.mxu0
    %913 = vrot.lane.b32.xlu0 %v905, 32
    %v914 = vpop.permute.xlu0 %913
    %915 = vrot.lane.b32.xlu0 %v908, 32
    %v916 = vpop.permute.xlu0 %915
    %v919 = vadd.f32 %v794, %v914
    %v920 = vadd.f32 %v795, %v916
    %vm921 = vcmp.gt.f32.partialorder %v919, 0.0
    %vm922 = vcmp.gt.f32.partialorder %v920, 0.0
    %v923 = vmul.f32 %v919, 0.01
    %v924 = vmul.f32 %v920, 0.01
    %v925 = vsel %vm921, %v919, %v923
    %v926 = vsel %vm922, %v920, %v924
    %v927 = vld [vmem:[#allocation8] sm:$0x1]
    %v928 = vpack.c.bf16 %v926, %v925
    %930 = vrot.lane.b32.xlu0 %v928, 96
    %v931 = vpop.permute.xlu0 %930
    %v934 = vsel %vm555, %v927, 0
    %936 = vmatprep.subr.bf16.mxu0 0
    %937 = vmatpush1.bf16.msra.mxu0 %v931
    %938 = vmatprep.subr.bf16.mxu0 0
    %939 = vmatpush1.bf16.msra.mxu0 0
    %940 = vmatprep.subr.bf16.mxu0 0
    %941 = vmatpush1.bf16.msra.mxu0 0
    %942 = vmatprep.subr.bf16.mxu0 0
    %943 = vmatpush1.bf16.msra.mxu0 0
    %944 = vmatprep.subr.bf16.mxu0 0
    %945 = vmatpush1.bf16.msra.mxu0 0
    %946 = vmatprep.subr.bf16.mxu0 0
    %947 = vmatpush1.bf16.msra.mxu0 0
    %948 = vmatprep.subr.bf16.mxu0 0
    %949 = vmatpush1.bf16.msra.mxu0 0
    %950 = vmatprep.subr.bf16.mxu0 0
    %951 = vmatpush1.bf16.msra.mxu0 0
    %952 = vmatprep.subr.bf16.mxu0 0
    %953 = vmatpush1.bf16.msra.mxu0 0
    %954 = vmatprep.subr.bf16.mxu0 0
    %955 = vmatpush1.bf16.msra.mxu0 0
    %956 = vmatprep.subr.bf16.mxu0 0
    %957 = vmatpush1.bf16.msra.mxu0 0
    %958 = vmatprep.subr.bf16.mxu0 0
    %959 = vmatpush1.bf16.msra.mxu0 0
    %960 = vmatprep.subr.bf16.mxu0 0
    %961 = vmatpush1.bf16.msra.mxu0 0
    %962 = vmatprep.subr.bf16.mxu0 0
    %963 = vmatpush1.bf16.msra.mxu0 0
    %964 = vmatprep.subr.bf16.mxu0 0
    %965 = vmatpush1.bf16.msra.mxu0 0
    %966 = vmatprep.subr.bf16.mxu0 0
    %967 = vmatpush1.bf16.msra.mxu0 0
    %968 = vmatprep.mubr.bf16.mxu0 0
    %969 = vmatmul.mubr.bf16.gmra.mrb[0].mxu0 %v934
    %v970 = vpop.f32.mrb[0].mxu0
    %v971 = vadd.f32 0.0, %v970
    %v972 = vpop.f32.mrb[0].mxu0
    %v973 = vpop.f32.mrb[0].mxu0
    %v974 = vpop.f32.mrb[0].mxu0
    %975 = vdwg.mxu0
    %v976 = vpack.c.bf16 %v971, %v971
    %v977 = vld [vmem:[#allocation14] sm:$0xff]
    %v978 = vld [vmem:[#allocation14 + $0x8] sm:$0xff]
    %v979 = vld [vmem:[#allocation14 + $0x10] sm:$0xff]
    %v980 = vld [vmem:[#allocation14 + $0x18] sm:$0xff]
    %v981 = vld [vmem:[#allocation16] sm:$0x3]
    %v982 = vmul.f32 %v981, 8.0
    %v984 = vlaneseq
    %v985 = vshrl.u32 %v984, 7
    %v986 = vsub.s32 0, %v985
    %v987 = vrot.slane %v982, %v986
    %v988 = vlaneseq
    %v989 = vshrl.u32 %v988, 7
    %v990 = vsub.s32 1, %v989
    %v991 = vrot.slane %v982, %v990
    %v998 = vunpack.c.l.b16 %v977
    %v999 = vunpack.c.h.b16 %v977
    %v1000 = vunpack.c.l.b16 %v978
    %v1001 = vunpack.c.h.b16 %v978
    %v1002 = vunpack.c.l.b16 %v979
    %v1003 = vunpack.c.h.b16 %v979
    %v1004 = vunpack.c.l.b16 %v980
    %v1005 = vunpack.c.h.b16 %v980
    %v1006 = vpack.c.b16 %v1000, %v998
    %v1007 = vpack.c.b16 %v1001, %v999
    %v1008 = vpack.c.b16 %v1004, %v1002
    %v1009 = vpack.c.b16 %v1005, %v1003
    %v1015 = vsel %vm693, %v976, 0
    %1017 = vmatprep.subr.bf16.mxu0 %v1007
    %1018 = vmatpush1.bf16.msra.mxu0 %v1006
    %1019 = vmatprep.subr.bf16.mxu0 %v1009
    %1020 = vmatpush1.bf16.msra.mxu0 %v1008
    %1021 = vmatprep.subr.bf16.mxu0 0
    %1022 = vmatpush1.bf16.msra.mxu0 0
    %1023 = vmatprep.subr.bf16.mxu0 0
    %1024 = vmatpush1.bf16.msra.mxu0 0
    %1025 = vmatprep.subr.bf16.mxu0 0
    %1026 = vmatpush1.bf16.msra.mxu0 0
    %1027 = vmatprep.subr.bf16.mxu0 0
    %1028 = vmatpush1.bf16.msra.mxu0 0
    %1029 = vmatprep.subr.bf16.mxu0 0
    %1030 = vmatpush1.bf16.msra.mxu0 0
    %1031 = vmatprep.subr.bf16.mxu0 0
    %1032 = vmatpush1.bf16.msra.mxu0 0
    %1033 = vmatprep.subr.bf16.mxu0 0
    %1034 = vmatpush1.bf16.msra.mxu0 0
    %1035 = vmatprep.subr.bf16.mxu0 0
    %1036 = vmatpush1.bf16.msra.mxu0 0
    %1037 = vmatprep.subr.bf16.mxu0 0
    %1038 = vmatpush1.bf16.msra.mxu0 0
    %1039 = vmatprep.subr.bf16.mxu0 0
    %1040 = vmatpush1.bf16.msra.mxu0 0
    %1041 = vmatprep.subr.bf16.mxu0 0
    %1042 = vmatpush1.bf16.msra.mxu0 0
    %1043 = vmatprep.subr.bf16.mxu0 0
    %1044 = vmatpush1.bf16.msra.mxu0 0
    %1045 = vmatprep.subr.bf16.mxu0 0
    %1046 = vmatpush1.bf16.msra.mxu0 0
    %1047 = vmatprep.subr.bf16.mxu0 0
    %1048 = vmatpush1.bf16.msra.mxu0 0
    %1049 = vmatprep.mubr.bf16.mxu0 0
    %1050 = vmatmul.mubr.bf16.gmra.mrb[0].mxu0 %v1015
    %v1051 = vpop.f32.mrb[0].mxu0
    %v1052 = vadd.f32 %v987, %v1051
    %v1053 = vpop.f32.mrb[0].mxu0
    %v1054 = vadd.f32 %v991, %v1053
    %v1055 = vpop.f32.mrb[0].mxu0
    %v1056 = vpop.f32.mrb[0].mxu0
    %1057 = vdwg.mxu0
    %s1058 = smul.u32 4, 8
    %s1059 = smul.u32 %s1058, 8
    %s1060 = sshll.u32 %s1059, 4
    %1061 = dma.done [#allocation4], %s1060
    %s1062 = smul.u32 4, 128
    %s1063 = smul.u32 %s1062, 2
    %s1064 = sshll.u32 %s1063, 4
    %1065 = dma.done %s495, %s1064
    %v1066 = vld [vmem:[%s2] sm:$0x1]
    %v1067 = vld [vmem:[#allocation2] sm:$0xff]
    %v1068 = vld [vmem:[#allocation2 + $0x8] sm:$0xff]
    %v1069 = vld [vmem:[#allocation2 + $0x10] sm:$0xff]
    %v1070 = vld [vmem:[#allocation2 + $0x18] sm:$0xff]
    %v1071 = vld [vmem:[#allocation2 + $0x20] sm:$0xff]
    %v1072 = vld [vmem:[#allocation2 + $0x28] sm:$0xff]
    %v1073 = vld [vmem:[#allocation2 + $0x30] sm:$0xff]
    %v1074 = vld [vmem:[#allocation2 + $0x38] sm:$0xff]
    %v1075 = vld [vmem:[#allocation2 + $0x40] sm:$0xff]
    %v1076 = vld [vmem:[#allocation2 + $0x48] sm:$0xff]
    %v1077 = vld [vmem:[#allocation2 + $0x50] sm:$0xff]
    %v1078 = vld [vmem:[#allocation2 + $0x58] sm:$0xff]
    %v1079 = vld [vmem:[#allocation2 + $0x60] sm:$0xff]
    %v1080 = vld [vmem:[#allocation2 + $0x68] sm:$0xff]
    %v1081 = vld [vmem:[#allocation2 + $0x70] sm:$0xff]
    %v1082 = vld [vmem:[#allocation2 + $0x78] sm:$0xff]
    %v1083 = vld [vmem:[#allocation2 + $0x80] sm:$0xff]
    %v1084 = vld [vmem:[#allocation2 + $0x88] sm:$0xff]
    %v1085 = vld [vmem:[#allocation2 + $0x90] sm:$0xff]
    %v1086 = vld [vmem:[#allocation2 + $0x98] sm:$0xff]
    %v1087 = vld [vmem:[#allocation2 + $0xa0] sm:$0xff]
    %v1088 = vld [vmem:[#allocation2 + $0xa8] sm:$0xff]
    %v1089 = vld [vmem:[#allocation2 + $0xb0] sm:$0xff]
    %v1090 = vld [vmem:[#allocation2 + $0xb8] sm:$0xff]
    %v1091 = vld [vmem:[#allocation2 + $0xc0] sm:$0xff]
    %v1092 = vld [vmem:[#allocation2 + $0xc8] sm:$0xff]
    %v1093 = vld [vmem:[#allocation2 + $0xd0] sm:$0xff]
    %v1094 = vld [vmem:[#allocation2 + $0xd8] sm:$0xff]
    %v1095 = vld [vmem:[#allocation2 + $0xe0] sm:$0xff]
    %v1096 = vld [vmem:[#allocation2 + $0xe8] sm:$0xff]
    %v1097 = vld [vmem:[#allocation2 + $0xf0] sm:$0xff]
    %v1098 = vld [vmem:[#allocation2 + $0xf8] sm:$0xff]
    %v1099 = vld [vmem:[#allocation17] sm:$0xff]
    %v1101 = vlaneseq
    %v1102 = vshrl.u32 %v1101, 7
    %v1103 = vsub.s32 0, %v1102
    %v1104 = vrot.slane %v1099, %v1103
    %v1105 = vlaneseq
    %v1106 = vshrl.u32 %v1105, 7
    %v1107 = vsub.s32 1, %v1106
    %v1108 = vrot.slane %v1099, %v1107
    %v1109 = vlaneseq
    %v1110 = vshrl.u32 %v1109, 7
    %v1111 = vsub.s32 2, %v1110
    %v1112 = vrot.slane %v1099, %v1111
    %v1113 = vlaneseq
    %v1114 = vshrl.u32 %v1113, 7
    %v1115 = vsub.s32 3, %v1114
    %v1116 = vrot.slane %v1099, %v1115
    %v1117 = vlaneseq
    %v1118 = vshrl.u32 %v1117, 7
    %v1119 = vsub.s32 4, %v1118
    %v1120 = vrot.slane %v1099, %v1119
    %v1121 = vlaneseq
    %v1122 = vshrl.u32 %v1121, 7
    %v1123 = vsub.s32 5, %v1122
    %v1124 = vrot.slane %v1099, %v1123
    %v1125 = vlaneseq
    %v1126 = vshrl.u32 %v1125, 7
    %v1127 = vsub.s32 6, %v1126
    %v1128 = vrot.slane %v1099, %v1127
    %v1129 = vlaneseq
    %v1130 = vshrl.u32 %v1129, 7
    %v1131 = vsub.s32 7, %v1130
    %v1132 = vrot.slane %v1099, %v1131
    %vm1141 = vcmask 523264
    %v1143 = vsel %vm1141, %v1066, 0
    %1145 = vmatprep.subr.bf16.mxu0 %v1068
    %1146 = vmatpush1.bf16.msra.mxu0 %v1067
    %1147 = vmatprep.subr.bf16.mxu0 %v1076
    %1148 = vmatpush1.bf16.msra.mxu0 %v1075
    %1149 = vmatprep.subr.bf16.mxu0 %v1084
    %1150 = vmatpush1.bf16.msra.mxu0 %v1083
    %1151 = vmatprep.subr.bf16.mxu0 %v1092
    %1152 = vmatpush1.bf16.msra.mxu0 %v1091
    %1153 = vmatprep.subr.bf16.mxu0 0
    %1154 = vmatpush1.bf16.msra.mxu0 0
    %1155 = vmatprep.subr.bf16.mxu0 0
    %1156 = vmatpush1.bf16.msra.mxu0 0
    %1157 = vmatprep.subr.bf16.mxu0 0
    %1158 = vmatpush1.bf16.msra.mxu0 0
    %1159 = vmatprep.subr.bf16.mxu0 0
    %1160 = vmatpush1.bf16.msra.mxu0 0
    %1161 = vmatprep.subr.bf16.mxu0 0
    %1162 = vmatpush1.bf16.msra.mxu0 0
    %1163 = vmatprep.subr.bf16.mxu0 0
    %1164 = vmatpush1.bf16.msra.mxu0 0
    %1165 = vmatprep.subr.bf16.mxu0 0
    %1166 = vmatpush1.bf16.msra.mxu0 0
    %1167 = vmatprep.subr.bf16.mxu0 0
    %1168 = vmatpush1.bf16.msra.mxu0 0
    %1169 = vmatprep.subr.bf16.mxu0 0
    %1170 = vmatpush1.bf16.msra.mxu0 0
    %1171 = vmatprep.subr.bf16.mxu0 0
    %1172 = vmatpush1.bf16.msra.mxu0 0
    %1173 = vmatprep.subr.bf16.mxu0 0
    %1174 = vmatpush1.bf16.msra.mxu0 0
    %1175 = vmatprep.subr.bf16.mxu0 0
    %1176 = vmatpush1.bf16.msra.mxu0 0
    %1177 = vmatprep.mubr.bf16.mxu0 0
    %1178 = vmatmul.mubr.bf16.gmra.mrb[0].mxu0 %v1143
    %v1179 = vpop.f32.mrb[0].mxu0
    %v1180 = vadd.f32 %v1104, %v1179
    %v1181 = vpop.f32.mrb[0].mxu0
    %v1182 = vadd.f32 %v1108, %v1181
    %v1183 = vpop.f32.mrb[0].mxu0
    %v1184 = vpop.f32.mrb[0].mxu0
    %1185 = vdwg.mxu0
    %1186 = vmatprep.subr.bf16.mxu0 %v1070
    %1187 = vmatpush1.bf16.msra.mxu0 %v1069
    %1188 = vmatprep.subr.bf16.mxu0 %v1078
    %1189 = vmatpush1.bf16.msra.mxu0 %v1077
    %1190 = vmatprep.subr.bf16.mxu0 %v1086
    %1191 = vmatpush1.bf16.msra.mxu0 %v1085
    %1192 = vmatprep.subr.bf16.mxu0 %v1094
    %1193 = vmatpush1.bf16.msra.mxu0 %v1093
    %1194 = vmatprep.subr.bf16.mxu0 0
    %1195 = vmatpush1.bf16.msra.mxu0 0
    %1196 = vmatprep.subr.bf16.mxu0 0
    %1197 = vmatpush1.bf16.msra.mxu0 0
    %1198 = vmatprep.subr.bf16.mxu0 0
    %1199 = vmatpush1.bf16.msra.mxu0 0
    %1200 = vmatprep.subr.bf16.mxu0 0
    %1201 = vmatpush1.bf16.msra.mxu0 0
    %1202 = vmatprep.subr.bf16.mxu0 0
    %1203 = vmatpush1.bf16.msra.mxu0 0
    %1204 = vmatprep.subr.bf16.mxu0 0
    %1205 = vmatpush1.bf16.msra.mxu0 0
    %1206 = vmatprep.subr.bf16.mxu0 0
    %1207 = vmatpush1.bf16.msra.mxu0 0
    %1208 = vmatprep.subr.bf16.mxu0 0
    %1209 = vmatpush1.bf16.msra.mxu0 0
    %1210 = vmatprep.subr.bf16.mxu0 0
    %1211 = vmatpush1.bf16.msra.mxu0 0
    %1212 = vmatprep.subr.bf16.mxu0 0
    %1213 = vmatpush1.bf16.msra.mxu0 0
    %1214 = vmatprep.subr.bf16.mxu0 0
    %1215 = vmatpush1.bf16.msra.mxu0 0
    %1216 = vmatprep.subr.bf16.mxu0 0
    %1217 = vmatpush1.bf16.msra.mxu0 0
    %1218 = vmatprep.mubr.bf16.mxu0 0
    %1219 = vmatmul.mubr.bf16.gmra.mrb[0].mxu0 %v1143
    %v1220 = vpop.f32.mrb[0].mxu0
    %v1221 = vadd.f32 %v1112, %v1220
    %v1222 = vpop.f32.mrb[0].mxu0
    %v1223 = vadd.f32 %v1116, %v1222
    %v1224 = vpop.f32.mrb[0].mxu0
    %v1225 = vpop.f32.mrb[0].mxu0
    %1226 = vdwg.mxu0
    %1227 = vmatprep.subr.bf16.mxu0 %v1072
    %1228 = vmatpush1.bf16.msra.mxu0 %v1071
    %1229 = vmatprep.subr.bf16.mxu0 %v1080
    %1230 = vmatpush1.bf16.msra.mxu0 %v1079
    %1231 = vmatprep.subr.bf16.mxu0 %v1088
    %1232 = vmatpush1.bf16.msra.mxu0 %v1087
    %1233 = vmatprep.subr.bf16.mxu0 %v1096
    %1234 = vmatpush1.bf16.msra.mxu0 %v1095
    %1235 = vmatprep.subr.bf16.mxu0 0
    %1236 = vmatpush1.bf16.msra.mxu0 0
    %1237 = vmatprep.subr.bf16.mxu0 0
    %1238 = vmatpush1.bf16.msra.mxu0 0
    %1239 = vmatprep.subr.bf16.mxu0 0
    %1240 = vmatpush1.bf16.msra.mxu0 0
    %1241 = vmatprep.subr.bf16.mxu0 0
    %1242 = vmatpush1.bf16.msra.mxu0 0
    %1243 = vmatprep.subr.bf16.mxu0 0
    %1244 = vmatpush1.bf16.msra.mxu0 0
    %1245 = vmatprep.subr.bf16.mxu0 0
    %1246 = vmatpush1.bf16.msra.mxu0 0
    %1247 = vmatprep.subr.bf16.mxu0 0
    %1248 = vmatpush1.bf16.msra.mxu0 0
    %1249 = vmatprep.subr.bf16.mxu0 0
    %1250 = vmatpush1.bf16.msra.mxu0 0
    %1251 = vmatprep.subr.bf16.mxu0 0
    %1252 = vmatpush1.bf16.msra.mxu0 0
    %1253 = vmatprep.subr.bf16.mxu0 0
    %1254 = vmatpush1.bf16.msra.mxu0 0
    %1255 = vmatprep.subr.bf16.mxu0 0
    %1256 = vmatpush1.bf16.msra.mxu0 0
    %1257 = vmatprep.subr.bf16.mxu0 0
    %1258 = vmatpush1.bf16.msra.mxu0 0
    %1259 = vmatprep.mubr.bf16.mxu0 0
    %1260 = vmatmul.mubr.bf16.gmra.mrb[0].mxu0 %v1143
    %v1261 = vpop.f32.mrb[0].mxu0
    %v1262 = vadd.f32 %v1120, %v1261
    %v1263 = vpop.f32.mrb[0].mxu0
    %v1264 = vadd.f32 %v1124, %v1263
    %v1265 = vpop.f32.mrb[0].mxu0
    %v1266 = vpop.f32.mrb[0].mxu0
    %1267 = vdwg.mxu0
    %1268 = vmatprep.subr.bf16.mxu0 %v1074
    %1269 = vmatpush1.bf16.msra.mxu0 %v1073
    %1270 = vmatprep.subr.bf16.mxu0 %v1082
    %1271 = vmatpush1.bf16.msra.mxu0 %v1081
    %1272 = vmatprep.subr.bf16.mxu0 %v1090
    %1273 = vmatpush1.bf16.msra.mxu0 %v1089
    %1274 = vmatprep.subr.bf16.mxu0 %v1098
    %1275 = vmatpush1.bf16.msra.mxu0 %v1097
    %1276 = vmatprep.subr.bf16.mxu0 0
    %1277 = vmatpush1.bf16.msra.mxu0 0
    %1278 = vmatprep.subr.bf16.mxu0 0
    %1279 = vmatpush1.bf16.msra.mxu0 0
    %1280 = vmatprep.subr.bf16.mxu0 0
    %1281 = vmatpush1.bf16.msra.mxu0 0
    %1282 = vmatprep.subr.bf16.mxu0 0
    %1283 = vmatpush1.bf16.msra.mxu0 0
    %1284 = vmatprep.subr.bf16.mxu0 0
    %1285 = vmatpush1.bf16.msra.mxu0 0
    %1286 = vmatprep.subr.bf16.mxu0 0
    %1287 = vmatpush1.bf16.msra.mxu0 0
    %1288 = vmatprep.subr.bf16.mxu0 0
    %1289 = vmatpush1.bf16.msra.mxu0 0
    %1290 = vmatprep.subr.bf16.mxu0 0
    %1291 = vmatpush1.bf16.msra.mxu0 0
    %1292 = vmatprep.subr.bf16.mxu0 0
    %1293 = vmatpush1.bf16.msra.mxu0 0
    %1294 = vmatprep.subr.bf16.mxu0 0
    %1295 = vmatpush1.bf16.msra.mxu0 0
    %1296 = vmatprep.subr.bf16.mxu0 0
    %1297 = vmatpush1.bf16.msra.mxu0 0
    %1298 = vmatprep.subr.bf16.mxu0 0
    %1299 = vmatpush1.bf16.msra.mxu0 0
    %1300 = vmatprep.mubr.bf16.mxu0 0
    %1301 = vmatmul.mubr.bf16.gmra.mrb[0].mxu0 %v1143
    %v1302 = vpop.f32.mrb[0].mxu0
    %v1303 = vadd.f32 %v1128, %v1302
    %v1304 = vpop.f32.mrb[0].mxu0
    %v1305 = vadd.f32 %v1132, %v1304
    %v1306 = vpop.f32.mrb[0].mxu0
    %v1307 = vpop.f32.mrb[0].mxu0
    %1308 = vdwg.mxu0
    %vm1309 = vcmp.gt.f32.partialorder %v1180, 0.0
    %vm1310 = vcmp.gt.f32.partialorder %v1182, 0.0
    %vm1311 = vcmp.gt.f32.partialorder %v1221, 0.0
    %vm1312 = vcmp.gt.f32.partialorder %v1223, 0.0
    %vm1313 = vcmp.gt.f32.partialorder %v1262, 0.0
    %vm1314 = vcmp.gt.f32.partialorder %v1264, 0.0
    %vm1315 = vcmp.gt.f32.partialorder %v1303, 0.0
    %vm1316 = vcmp.gt.f32.partialorder %v1305, 0.0
    %v1317 = vmul.f32 %v1180, 0.01
    %v1318 = vmul.f32 %v1182, 0.01
    %v1319 = vmul.f32 %v1221, 0.01
    %v1320 = vmul.f32 %v1223, 0.01
    %v1321 = vmul.f32 %v1262, 0.01
    %v1322 = vmul.f32 %v1264, 0.01
    %v1323 = vmul.f32 %v1303, 0.01
    %v1324 = vmul.f32 %v1305, 0.01
    %v1325 = vsel %vm1309, %v1180, %v1317
    %v1326 = vsel %vm1310, %v1182, %v1318
    %v1327 = vsel %vm1311, %v1221, %v1319
    %v1328 = vsel %vm1312, %v1223, %v1320
    %v1329 = vsel %vm1313, %v1262, %v1321
    %v1330 = vsel %vm1314, %v1264, %v1322
    %v1331 = vsel %vm1315, %v1303, %v1323
    %v1332 = vsel %vm1316, %v1305, %v1324
    %v1333 = vpack.c.bf16 %v1325, %v1325
    %v1334 = vpack.c.bf16 %v1326, %v1326
    %v1335 = vpack.c.bf16 %v1327, %v1327
    %v1336 = vpack.c.bf16 %v1328, %v1328
    %v1337 = vpack.c.bf16 %v1329, %v1329
    %v1338 = vpack.c.bf16 %v1330, %v1330
    %v1339 = vpack.c.bf16 %v1331, %v1331
    %v1340 = vpack.c.bf16 %v1332, %v1332
    %v1341 = vld [vmem:[#allocation3] sm:$0xff]
    %v1342 = vld [vmem:[#allocation3 + $0x8] sm:$0xff]
    %v1343 = vld [vmem:[#allocation3 + $0x10] sm:$0xff]
    %v1344 = vld [vmem:[#allocation3 + $0x18] sm:$0xff]
    %v1345 = vld [vmem:[#allocation3 + $0x20] sm:$0xff]
    %v1346 = vld [vmem:[#allocation3 + $0x28] sm:$0xff]
    %v1347 = vld [vmem:[#allocation3 + $0x30] sm:$0xff]
    %v1348 = vld [vmem:[#allocation3 + $0x38] sm:$0xff]
    %v1349 = vld [vmem:[#allocation3 + $0x40] sm:$0xff]
    %v1350 = vld [vmem:[#allocation3 + $0x48] sm:$0xff]
    %v1351 = vld [vmem:[#allocation3 + $0x50] sm:$0xff]
    %v1352 = vld [vmem:[#allocation3 + $0x58] sm:$0xff]
    %v1353 = vld [vmem:[#allocation3 + $0x60] sm:$0xff]
    %v1354 = vld [vmem:[#allocation3 + $0x68] sm:$0xff]
    %v1355 = vld [vmem:[#allocation3 + $0x70] sm:$0xff]
    %v1356 = vld [vmem:[#allocation3 + $0x78] sm:$0xff]
    %v1357 = vld [vmem:[#allocation3 + $0x80] sm:$0xff]
    %v1358 = vld [vmem:[#allocation3 + $0x88] sm:$0xff]
    %v1359 = vld [vmem:[#allocation3 + $0x90] sm:$0xff]
    %v1360 = vld [vmem:[#allocation3 + $0x98] sm:$0xff]
    %v1361 = vld [vmem:[#allocation3 + $0xa0] sm:$0xff]
    %v1362 = vld [vmem:[#allocation3 + $0xa8] sm:$0xff]
    %v1363 = vld [vmem:[#allocation3 + $0xb0] sm:$0xff]
    %v1364 = vld [vmem:[#allocation3 + $0xb8] sm:$0xff]
    %v1365 = vld [vmem:[#allocation3 + $0xc0] sm:$0xff]
    %v1366 = vld [vmem:[#allocation3 + $0xc8] sm:$0xff]
    %v1367 = vld [vmem:[#allocation3 + $0xd0] sm:$0xff]
    %v1368 = vld [vmem:[#allocation3 + $0xd8] sm:$0xff]
    %v1369 = vld [vmem:[#allocation3 + $0xe0] sm:$0xff]
    %v1370 = vld [vmem:[#allocation3 + $0xe8] sm:$0xff]
    %v1371 = vld [vmem:[#allocation3 + $0xf0] sm:$0xff]
    %v1372 = vld [vmem:[#allocation3 + $0xf8] sm:$0xff]
    %v1373 = vld [vmem:[#allocation3 + $0x100] sm:$0xff]
    %v1374 = vld [vmem:[#allocation3 + $0x108] sm:$0xff]
    %v1375 = vld [vmem:[#allocation3 + $0x110] sm:$0xff]
    %v1376 = vld [vmem:[#allocation3 + $0x118] sm:$0xff]
    %v1377 = vld [vmem:[#allocation3 + $0x120] sm:$0xff]
    %v1378 = vld [vmem:[#allocation3 + $0x128] sm:$0xff]
    %v1379 = vld [vmem:[#allocation3 + $0x130] sm:$0xff]
    %v1380 = vld [vmem:[#allocation3 + $0x138] sm:$0xff]
    %v1381 = vld [vmem:[#allocation3 + $0x140] sm:$0xff]
    %v1382 = vld [vmem:[#allocation3 + $0x148] sm:$0xff]
    %v1383 = vld [vmem:[#allocation3 + $0x150] sm:$0xff]
    %v1384 = vld [vmem:[#allocation3 + $0x158] sm:$0xff]
    %v1385 = vld [vmem:[#allocation3 + $0x160] sm:$0xff]
    %v1386 = vld [vmem:[#allocation3 + $0x168] sm:$0xff]
    %v1387 = vld [vmem:[#allocation3 + $0x170] sm:$0xff]
    %v1388 = vld [vmem:[#allocation3 + $0x178] sm:$0xff]
    %v1389 = vld [vmem:[#allocation3 + $0x180] sm:$0xff]
    %v1390 = vld [vmem:[#allocation3 + $0x188] sm:$0xff]
    %v1391 = vld [vmem:[#allocation3 + $0x190] sm:$0xff]
    %v1392 = vld [vmem:[#allocation3 + $0x198] sm:$0xff]
    %v1393 = vld [vmem:[#allocation3 + $0x1a0] sm:$0xff]
    %v1394 = vld [vmem:[#allocation3 + $0x1a8] sm:$0xff]
    %v1395 = vld [vmem:[#allocation3 + $0x1b0] sm:$0xff]
    %v1396 = vld [vmem:[#allocation3 + $0x1b8] sm:$0xff]
    %v1397 = vld [vmem:[#allocation3 + $0x1c0] sm:$0xff]
    %v1398 = vld [vmem:[#allocation3 + $0x1c8] sm:$0xff]
    %v1399 = vld [vmem:[#allocation3 + $0x1d0] sm:$0xff]
    %v1400 = vld [vmem:[#allocation3 + $0x1d8] sm:$0xff]
    %v1401 = vld [vmem:[#allocation3 + $0x1e0] sm:$0xff]
    %v1402 = vld [vmem:[#allocation3 + $0x1e8] sm:$0xff]
    %v1403 = vld [vmem:[#allocation3 + $0x1f0] sm:$0xff]
    %v1404 = vld [vmem:[#allocation3 + $0x1f8] sm:$0xff]
    %v1405 = vld [vmem:[#allocation3 + $0x200] sm:$0xff]
    %v1406 = vld [vmem:[#allocation3 + $0x208] sm:$0xff]
    %v1407 = vld [vmem:[#allocation3 + $0x210] sm:$0xff]
    %v1408 = vld [vmem:[#allocation3 + $0x218] sm:$0xff]
    %v1409 = vld [vmem:[#allocation3 + $0x220] sm:$0xff]
    %v1410 = vld [vmem:[#allocation3 + $0x228] sm:$0xff]
    %v1411 = vld [vmem:[#allocation3 + $0x230] sm:$0xff]
    %v1412 = vld [vmem:[#allocation3 + $0x238] sm:$0xff]
    %v1413 = vld [vmem:[#allocation3 + $0x240] sm:$0xff]
    %v1414 = vld [vmem:[#allocation3 + $0x248] sm:$0xff]
    %v1415 = vld [vmem:[#allocation3 + $0x250] sm:$0xff]
    %v1416 = vld [vmem:[#allocation3 + $0x258] sm:$0xff]
    %v1417 = vld [vmem:[#allocation3 + $0x260] sm:$0xff]
    %v1418 = vld [vmem:[#allocation3 + $0x268] sm:$0xff]
    %v1419 = vld [vmem:[#allocation3 + $0x270] sm:$0xff]
    %v1420 = vld [vmem:[#allocation3 + $0x278] sm:$0xff]
    %v1421 = vld [vmem:[#allocation3 + $0x280] sm:$0xff]
    %v1422 = vld [vmem:[#allocation3 + $0x288] sm:$0xff]
    %v1423 = vld [vmem:[#allocation3 + $0x290] sm:$0xff]
    %v1424 = vld [vmem:[#allocation3 + $0x298] sm:$0xff]
    %v1425 = vld [vmem:[#allocation3 + $0x2a0] sm:$0xff]
    %v1426 = vld [vmem:[#allocation3 + $0x2a8] sm:$0xff]
    %v1427 = vld [vmem:[#allocation3 + $0x2b0] sm:$0xff]
    %v1428 = vld [vmem:[#allocation3 + $0x2b8] sm:$0xff]
    %v1429 = vld [vmem:[#allocation3 + $0x2c0] sm:$0xff]
    %v1430 = vld [vmem:[#allocation3 + $0x2c8] sm:$0xff]
    %v1431 = vld [vmem:[#allocation3 + $0x2d0] sm:$0xff]
    %v1432 = vld [vmem:[#allocation3 + $0x2d8] sm:$0xff]
    %v1433 = vld [vmem:[#allocation3 + $0x2e0] sm:$0xff]
    %v1434 = vld [vmem:[#allocation3 + $0x2e8] sm:$0xff]
    %v1435 = vld [vmem:[#allocation3 + $0x2f0] sm:$0xff]
    %v1436 = vld [vmem:[#allocation3 + $0x2f8] sm:$0xff]
    %v1437 = vld [vmem:[#allocation3 + $0x300] sm:$0xff]
    %v1438 = vld [vmem:[#allocation3 + $0x308] sm:$0xff]
    %v1439 = vld [vmem:[#allocation3 + $0x310] sm:$0xff]
    %v1440 = vld [vmem:[#allocation3 + $0x318] sm:$0xff]
    %v1441 = vld [vmem:[#allocation3 + $0x320] sm:$0xff]
    %v1442 = vld [vmem:[#allocation3 + $0x328] sm:$0xff]
    %v1443 = vld [vmem:[#allocation3 + $0x330] sm:$0xff]
    %v1444 = vld [vmem:[#allocation3 + $0x338] sm:$0xff]
    %v1445 = vld [vmem:[#allocation3 + $0x340] sm:$0xff]
    %v1446 = vld [vmem:[#allocation3 + $0x348] sm:$0xff]
    %v1447 = vld [vmem:[#allocation3 + $0x350] sm:$0xff]
    %v1448 = vld [vmem:[#allocation3 + $0x358] sm:$0xff]
    %v1449 = vld [vmem:[#allocation3 + $0x360] sm:$0xff]
    %v1450 = vld [vmem:[#allocation3 + $0x368] sm:$0xff]
    %v1451 = vld [vmem:[#allocation3 + $0x370] sm:$0xff]
    %v1452 = vld [vmem:[#allocation3 + $0x378] sm:$0xff]
    %v1453 = vld [vmem:[#allocation3 + $0x380] sm:$0xff]
    %v1454 = vld [vmem:[#allocation3 + $0x388] sm:$0xff]
    %v1455 = vld [vmem:[#allocation3 + $0x390] sm:$0xff]
    %v1456 = vld [vmem:[#allocation3 + $0x398] sm:$0xff]
    %v1457 = vld [vmem:[#allocation3 + $0x3a0] sm:$0xff]
    %v1458 = vld [vmem:[#allocation3 + $0x3a8] sm:$0xff]
    %v1459 = vld [vmem:[#allocation3 + $0x3b0] sm:$0xff]
    %v1460 = vld [vmem:[#allocation3 + $0x3b8] sm:$0xff]
    %v1461 = vld [vmem:[#allocation3 + $0x3c0] sm:$0xff]
    %v1462 = vld [vmem:[#allocation3 + $0x3c8] sm:$0xff]
    %v1463 = vld [vmem:[#allocation3 + $0x3d0] sm:$0xff]
    %v1464 = vld [vmem:[#allocation3 + $0x3d8] sm:$0xff]
    %v1465 = vld [vmem:[#allocation3 + $0x3e0] sm:$0xff]
    %v1466 = vld [vmem:[#allocation3 + $0x3e8] sm:$0xff]
    %v1467 = vld [vmem:[#allocation3 + $0x3f0] sm:$0xff]
    %v1468 = vld [vmem:[#allocation3 + $0x3f8] sm:$0xff]
    %v1469 = vld [vmem:[%s13] sm:$0x3]
    %v1471 = vlaneseq
    %v1472 = vshrl.u32 %v1471, 7
    %v1473 = vsub.s32 0, %v1472
    %v1474 = vrot.slane %v1469, %v1473
    %v1475 = vlaneseq
    %v1476 = vshrl.u32 %v1475, 7
    %v1477 = vsub.s32 1, %v1476
    %v1478 = vrot.slane %v1469, %v1477
    %1481 = vmatprep.subr.bf16.mxu0 %v1342
    %1482 = vmatpush1.bf16.msra.mxu0 %v1341
    %1483 = vmatprep.subr.bf16.mxu0 %v1344
    %1484 = vmatpush1.bf16.msra.mxu0 %v1343
    %1485 = vmatprep.subr.bf16.mxu0 %v1346
    %1486 = vmatpush1.bf16.msra.mxu0 %v1345
    %1487 = vmatprep.subr.bf16.mxu0 %v1348
    %1488 = vmatpush1.bf16.msra.mxu0 %v1347
    %1489 = vmatprep.subr.bf16.mxu0 %v1350
    %1490 = vmatpush1.bf16.msra.mxu0 %v1349
    %1491 = vmatprep.subr.bf16.mxu0 %v1352
    %1492 = vmatpush1.bf16.msra.mxu0 %v1351
    %1493 = vmatprep.subr.bf16.mxu0 %v1354
    %1494 = vmatpush1.bf16.msra.mxu0 %v1353
    %1495 = vmatprep.subr.bf16.mxu0 %v1356
    %1496 = vmatpush1.bf16.msra.mxu0 %v1355
    %1497 = vmatprep.subr.bf16.mxu0 %v1358
    %1498 = vmatpush1.bf16.msra.mxu0 %v1357
    %1499 = vmatprep.subr.bf16.mxu0 %v1360
    %1500 = vmatpush1.bf16.msra.mxu0 %v1359
    %1501 = vmatprep.subr.bf16.mxu0 %v1362
    %1502 = vmatpush1.bf16.msra.mxu0 %v1361
    %1503 = vmatprep.subr.bf16.mxu0 %v1364
    %1504 = vmatpush1.bf16.msra.mxu0 %v1363
    %1505 = vmatprep.subr.bf16.mxu0 %v1366
    %1506 = vmatpush1.bf16.msra.mxu0 %v1365
    %1507 = vmatprep.subr.bf16.mxu0 %v1368
    %1508 = vmatpush1.bf16.msra.mxu0 %v1367
    %1509 = vmatprep.subr.bf16.mxu0 %v1370
    %1510 = vmatpush1.bf16.msra.mxu0 %v1369
    %1511 = vmatprep.subr.bf16.mxu0 %v1372
    %1512 = vmatpush1.bf16.msra.mxu0 %v1371
    %1513 = vmatprep.mubr.bf16.mxu0 %v1334
    %1514 = vmatmul.mubr.bf16.gmra.mrb[0].mxu0 %v1333
    %v1515 = vpop.f32.mrb[0].mxu0
    %v1516 = vadd.f32 %v1474, %v1515
    %v1517 = vpop.f32.mrb[0].mxu0
    %v1518 = vadd.f32 %v1478, %v1517
    %v1519 = vpop.f32.mrb[0].mxu0
    %v1520 = vpop.f32.mrb[0].mxu0
    %1521 = vdwg.mxu0
    %1522 = vmatprep.subr.bf16.mxu0 %v1374
    %1523 = vmatpush1.bf16.msra.mxu0 %v1373
    %1524 = vmatprep.subr.bf16.mxu0 %v1376
    %1525 = vmatpush1.bf16.msra.mxu0 %v1375
    %1526 = vmatprep.subr.bf16.mxu0 %v1378
    %1527 = vmatpush1.bf16.msra.mxu0 %v1377
    %1528 = vmatprep.subr.bf16.mxu0 %v1380
    %1529 = vmatpush1.bf16.msra.mxu0 %v1379
    %1530 = vmatprep.subr.bf16.mxu0 %v1382
    %1531 = vmatpush1.bf16.msra.mxu0 %v1381
    %1532 = vmatprep.subr.bf16.mxu0 %v1384
    %1533 = vmatpush1.bf16.msra.mxu0 %v1383
    %1534 = vmatprep.subr.bf16.mxu0 %v1386
    %1535 = vmatpush1.bf16.msra.mxu0 %v1385
    %1536 = vmatprep.subr.bf16.mxu0 %v1388
    %1537 = vmatpush1.bf16.msra.mxu0 %v1387
    %1538 = vmatprep.subr.bf16.mxu0 %v1390
    %1539 = vmatpush1.bf16.msra.mxu0 %v1389
    %1540 = vmatprep.subr.bf16.mxu0 %v1392
    %1541 = vmatpush1.bf16.msra.mxu0 %v1391
    %1542 = vmatprep.subr.bf16.mxu0 %v1394
    %1543 = vmatpush1.bf16.msra.mxu0 %v1393
    %1544 = vmatprep.subr.bf16.mxu0 %v1396
    %1545 = vmatpush1.bf16.msra.mxu0 %v1395
    %1546 = vmatprep.subr.bf16.mxu0 %v1398
    %1547 = vmatpush1.bf16.msra.mxu0 %v1397
    %1548 = vmatprep.subr.bf16.mxu0 %v1400
    %1549 = vmatpush1.bf16.msra.mxu0 %v1399
    %1550 = vmatprep.subr.bf16.mxu0 %v1402
    %1551 = vmatpush1.bf16.msra.mxu0 %v1401
    %1552 = vmatprep.subr.bf16.mxu0 %v1404
    %1553 = vmatpush1.bf16.msra.mxu0 %v1403
    %1554 = vmatprep.mubr.bf16.mxu0 %v1336
    %1555 = vmatmul.mubr.bf16.gmra.mrb[0].mxu0 %v1335
    %v1556 = vpop.f32.mrb[0].mxu0
    %v1557 = vadd.f32 %v1516, %v1556
    %v1558 = vpop.f32.mrb[0].mxu0
    %v1559 = vadd.f32 %v1518, %v1558
    %v1560 = vpop.f32.mrb[0].mxu0
    %v1561 = vpop.f32.mrb[0].mxu0
    %1562 = vdwg.mxu0
    %1563 = vmatprep.subr.bf16.mxu0 %v1406
    %1564 = vmatpush1.bf16.msra.mxu0 %v1405
    %1565 = vmatprep.subr.bf16.mxu0 %v1408
    %1566 = vmatpush1.bf16.msra.mxu0 %v1407
    %1567 = vmatprep.subr.bf16.mxu0 %v1410
    %1568 = vmatpush1.bf16.msra.mxu0 %v1409
    %1569 = vmatprep.subr.bf16.mxu0 %v1412
    %1570 = vmatpush1.bf16.msra.mxu0 %v1411
    %1571 = vmatprep.subr.bf16.mxu0 %v1414
    %1572 = vmatpush1.bf16.msra.mxu0 %v1413
    %1573 = vmatprep.subr.bf16.mxu0 %v1416
    %1574 = vmatpush1.bf16.msra.mxu0 %v1415
    %1575 = vmatprep.subr.bf16.mxu0 %v1418
    %1576 = vmatpush1.bf16.msra.mxu0 %v1417
    %1577 = vmatprep.subr.bf16.mxu0 %v1420
    %1578 = vmatpush1.bf16.msra.mxu0 %v1419
    %1579 = vmatprep.subr.bf16.mxu0 %v1422
    %1580 = vmatpush1.bf16.msra.mxu0 %v1421
    %1581 = vmatprep.subr.bf16.mxu0 %v1424
    %1582 = vmatpush1.bf16.msra.mxu0 %v1423
    %1583 = vmatprep.subr.bf16.mxu0 %v1426
    %1584 = vmatpush1.bf16.msra.mxu0 %v1425
    %1585 = vmatprep.subr.bf16.mxu0 %v1428
    %1586 = vmatpush1.bf16.msra.mxu0 %v1427
    %1587 = vmatprep.subr.bf16.mxu0 %v1430
    %1588 = vmatpush1.bf16.msra.mxu0 %v1429
    %1589 = vmatprep.subr.bf16.mxu0 %v1432
    %1590 = vmatpush1.bf16.msra.mxu0 %v1431
    %1591 = vmatprep.subr.bf16.mxu0 %v1434
    %1592 = vmatpush1.bf16.msra.mxu0 %v1433
    %1593 = vmatprep.subr.bf16.mxu0 %v1436
    %1594 = vmatpush1.bf16.msra.mxu0 %v1435
    %1595 = vmatprep.mubr.bf16.mxu0 %v1338
    %1596 = vmatmul.mubr.bf16.gmra.mrb[0].mxu0 %v1337
    %v1597 = vpop.f32.mrb[0].mxu0
    %v1598 = vadd.f32 %v1557, %v1597
    %v1599 = vpop.f32.mrb[0].mxu0
    %v1600 = vadd.f32 %v1559, %v1599
    %v1601 = vpop.f32.mrb[0].mxu0
    %v1602 = vpop.f32.mrb[0].mxu0
    %1603 = vdwg.mxu0
    %1604 = vmatprep.subr.bf16.mxu0 %v1438
    %1605 = vmatpush1.bf16.msra.mxu0 %v1437
    %1606 = vmatprep.subr.bf16.mxu0 %v1440
    %1607 = vmatpush1.bf16.msra.mxu0 %v1439
    %1608 = vmatprep.subr.bf16.mxu0 %v1442
    %1609 = vmatpush1.bf16.msra.mxu0 %v1441
    %1610 = vmatprep.subr.bf16.mxu0 %v1444
    %1611 = vmatpush1.bf16.msra.mxu0 %v1443
    %1612 = vmatprep.subr.bf16.mxu0 %v1446
    %1613 = vmatpush1.bf16.msra.mxu0 %v1445
    %1614 = vmatprep.subr.bf16.mxu0 %v1448
    %1615 = vmatpush1.bf16.msra.mxu0 %v1447
    %1616 = vmatprep.subr.bf16.mxu0 %v1450
    %1617 = vmatpush1.bf16.msra.mxu0 %v1449
    %1618 = vmatprep.subr.bf16.mxu0 %v1452
    %1619 = vmatpush1.bf16.msra.mxu0 %v1451
    %1620 = vmatprep.subr.bf16.mxu0 %v1454
    %1621 = vmatpush1.bf16.msra.mxu0 %v1453
    %1622 = vmatprep.subr.bf16.mxu0 %v1456
    %1623 = vmatpush1.bf16.msra.mxu0 %v1455
    %1624 = vmatprep.subr.bf16.mxu0 %v1458
    %1625 = vmatpush1.bf16.msra.mxu0 %v1457
    %1626 = vmatprep.subr.bf16.mxu0 %v1460
    %1627 = vmatpush1.bf16.msra.mxu0 %v1459
    %1628 = vmatprep.subr.bf16.mxu0 %v1462
    %1629 = vmatpush1.bf16.msra.mxu0 %v1461
    %1630 = vmatprep.subr.bf16.mxu0 %v1464
    %1631 = vmatpush1.bf16.msra.mxu0 %v1463
    %1632 = vmatprep.subr.bf16.mxu0 %v1466
    %1633 = vmatpush1.bf16.msra.mxu0 %v1465
    %1634 = vmatprep.subr.bf16.mxu0 %v1468
    %1635 = vmatpush1.bf16.msra.mxu0 %v1467
    %1636 = vmatprep.mubr.bf16.mxu0 %v1340
    %1637 = vmatmul.mubr.bf16.gmra.mrb[0].mxu0 %v1339
    %v1638 = vpop.f32.mrb[0].mxu0
    %v1639 = vadd.f32 %v1598, %v1638
    %v1640 = vpop.f32.mrb[0].mxu0
    %v1641 = vadd.f32 %v1600, %v1640
    %v1642 = vpop.f32.mrb[0].mxu0
    %v1643 = vpop.f32.mrb[0].mxu0
    %1644 = vdwg.mxu0
    %vm1645 = vcmp.gt.f32.partialorder %v1639, 0.0
    %vm1646 = vcmp.gt.f32.partialorder %v1641, 0.0
    %v1647 = vmul.f32 %v1639, 0.01
    %v1648 = vmul.f32 %v1641, 0.01
    %v1649 = vsel %vm1645, %v1639, %v1647
    %v1650 = vsel %vm1646, %v1641, %v1648
    %v1651 = vpack.c.bf16 %v1052, %v1052
    %v1652 = vpack.c.bf16 %v1054, %v1054
    %v1653 = vpack.c.bf16 %v1649, %v1649
    %v1654 = vpack.c.bf16 %v1650, %v1650
    %v1655 = vld [vmem:[#allocation19] sm:$0xff]
    %v1656 = vld [vmem:[#allocation19 + $0x8] sm:$0xff]
    %v1657 = vld [vmem:[#allocation19 + $0x10] sm:$0xff]
    %v1658 = vld [vmem:[#allocation19 + $0x18] sm:$0xff]
    %v1659 = vld [vmem:[#allocation19 + $0x20] sm:$0xff]
    %v1660 = vld [vmem:[#allocation19 + $0x28] sm:$0xff]
    %v1661 = vld [vmem:[#allocation19 + $0x30] sm:$0xff]
    %v1662 = vld [vmem:[#allocation19 + $0x38] sm:$0xff]
    %v1663 = vld [vmem:[#allocation19 + $0x40] sm:$0xff]
    %v1664 = vld [vmem:[#allocation19 + $0x48] sm:$0xff]
    %v1665 = vld [vmem:[#allocation19 + $0x50] sm:$0xff]
    %v1666 = vld [vmem:[#allocation19 + $0x58] sm:$0xff]
    %v1667 = vld [vmem:[#allocation19 + $0x60] sm:$0xff]
    %v1668 = vld [vmem:[#allocation19 + $0x68] sm:$0xff]
    %v1669 = vld [vmem:[#allocation19 + $0x70] sm:$0xff]
    %v1670 = vld [vmem:[#allocation19 + $0x78] sm:$0xff]
    %v1671 = vld [vmem:[#allocation19 + $0x80] sm:$0xff]
    %v1672 = vld [vmem:[#allocation19 + $0x88] sm:$0xff]
    %v1673 = vld [vmem:[#allocation19 + $0x90] sm:$0xff]
    %v1674 = vld [vmem:[#allocation19 + $0x98] sm:$0xff]
    %v1675 = vld [vmem:[#allocation19 + $0xa0] sm:$0xff]
    %v1676 = vld [vmem:[#allocation19 + $0xa8] sm:$0xff]
    %v1677 = vld [vmem:[#allocation19 + $0xb0] sm:$0xff]
    %v1678 = vld [vmem:[#allocation19 + $0xb8] sm:$0xff]
    %v1679 = vld [vmem:[#allocation19 + $0xc0] sm:$0xff]
    %v1680 = vld [vmem:[#allocation19 + $0xc8] sm:$0xff]
    %v1681 = vld [vmem:[#allocation19 + $0xd0] sm:$0xff]
    %v1682 = vld [vmem:[#allocation19 + $0xd8] sm:$0xff]
    %v1683 = vld [vmem:[#allocation19 + $0xe0] sm:$0xff]
    %v1684 = vld [vmem:[#allocation19 + $0xe8] sm:$0xff]
    %v1685 = vld [vmem:[#allocation19 + $0xf0] sm:$0xff]
    %v1686 = vld [vmem:[#allocation19 + $0xf8] sm:$0xff]
    %v1687 = vld [vmem:[#allocation19 + $0x100] sm:$0xff]
    %v1688 = vld [vmem:[#allocation19 + $0x108] sm:$0xff]
    %v1689 = vld [vmem:[#allocation19 + $0x110] sm:$0xff]
    %v1690 = vld [vmem:[#allocation19 + $0x118] sm:$0xff]
    %v1691 = vld [vmem:[#allocation19 + $0x120] sm:$0xff]
    %v1692 = vld [vmem:[#allocation19 + $0x128] sm:$0xff]
    %v1693 = vld [vmem:[#allocation19 + $0x130] sm:$0xff]
    %v1694 = vld [vmem:[#allocation19 + $0x138] sm:$0xff]
    %v1695 = vld [vmem:[#allocation19 + $0x140] sm:$0xff]
    %v1696 = vld [vmem:[#allocation19 + $0x148] sm:$0xff]
    %v1697 = vld [vmem:[#allocation19 + $0x150] sm:$0xff]
    %v1698 = vld [vmem:[#allocation19 + $0x158] sm:$0xff]
    %v1699 = vld [vmem:[#allocation19 + $0x160] sm:$0xff]
    %v1700 = vld [vmem:[#allocation19 + $0x168] sm:$0xff]
    %v1701 = vld [vmem:[#allocation19 + $0x170] sm:$0xff]
    %v1702 = vld [vmem:[#allocation19 + $0x178] sm:$0xff]
    %v1703 = vld [vmem:[#allocation19 + $0x180] sm:$0xff]
    %v1704 = vld [vmem:[#allocation19 + $0x188] sm:$0xff]
    %v1705 = vld [vmem:[#allocation19 + $0x190] sm:$0xff]
    %v1706 = vld [vmem:[#allocation19 + $0x198] sm:$0xff]
    %v1707 = vld [vmem:[#allocation19 + $0x1a0] sm:$0xff]
    %v1708 = vld [vmem:[#allocation19 + $0x1a8] sm:$0xff]
    %v1709 = vld [vmem:[#allocation19 + $0x1b0] sm:$0xff]
    %v1710 = vld [vmem:[#allocation19 + $0x1b8] sm:$0xff]
    %v1711 = vld [vmem:[#allocation19 + $0x1c0] sm:$0xff]
    %v1712 = vld [vmem:[#allocation19 + $0x1c8] sm:$0xff]
    %v1713 = vld [vmem:[#allocation19 + $0x1d0] sm:$0xff]
    %v1714 = vld [vmem:[#allocation19 + $0x1d8] sm:$0xff]
    %v1715 = vld [vmem:[#allocation19 + $0x1e0] sm:$0xff]
    %v1716 = vld [vmem:[#allocation19 + $0x1e8] sm:$0xff]
    %v1717 = vld [vmem:[#allocation19 + $0x1f0] sm:$0xff]
    %v1718 = vld [vmem:[#allocation19 + $0x1f8] sm:$0xff]
    %v1719 = vld [vmem:[%s15] sm:$0x3]
    %v1721 = vlaneseq
    %v1722 = vshrl.u32 %v1721, 7
    %v1723 = vsub.s32 0, %v1722
    %v1724 = vrot.slane %v1719, %v1723
    %v1725 = vlaneseq
    %v1726 = vshrl.u32 %v1725, 7
    %v1727 = vsub.s32 1, %v1726
    %v1728 = vrot.slane %v1719, %v1727
    %v1795 = vunpack.c.l.b16 %v1655
    %v1796 = vunpack.c.h.b16 %v1655
    %v1797 = vunpack.c.l.b16 %v1656
    %v1798 = vunpack.c.h.b16 %v1656
    %v1799 = vunpack.c.l.b16 %v1657
    %v1800 = vunpack.c.h.b16 %v1657
    %v1801 = vunpack.c.l.b16 %v1658
    %v1802 = vunpack.c.h.b16 %v1658
    %v1803 = vunpack.c.l.b16 %v1659
    %v1804 = vunpack.c.h.b16 %v1659
    %v1805 = vunpack.c.l.b16 %v1660
    %v1806 = vunpack.c.h.b16 %v1660
    %v1807 = vunpack.c.l.b16 %v1661
    %v1808 = vunpack.c.h.b16 %v1661
    %v1809 = vunpack.c.l.b16 %v1662
    %v1810 = vunpack.c.h.b16 %v1662
    %v1811 = vunpack.c.l.b16 %v1663
    %v1812 = vunpack.c.h.b16 %v1663
    %v1813 = vunpack.c.l.b16 %v1664
    %v1814 = vunpack.c.h.b16 %v1664
    %v1815 = vunpack.c.l.b16 %v1665
    %v1816 = vunpack.c.h.b16 %v1665
    %v1817 = vunpack.c.l.b16 %v1666
    %v1818 = vunpack.c.h.b16 %v1666
    %v1819 = vunpack.c.l.b16 %v1667
    %v1820 = vunpack.c.h.b16 %v1667
    %v1821 = vunpack.c.l.b16 %v1668
    %v1822 = vunpack.c.h.b16 %v1668
    %v1823 = vunpack.c.l.b16 %v1669
    %v1824 = vunpack.c.h.b16 %v1669
    %v1825 = vunpack.c.l.b16 %v1670
    %v1826 = vunpack.c.h.b16 %v1670
    %v1827 = vunpack.c.l.b16 %v1671
    %v1828 = vunpack.c.h.b16 %v1671
    %v1829 = vunpack.c.l.b16 %v1672
    %v1830 = vunpack.c.h.b16 %v1672
    %v1831 = vunpack.c.l.b16 %v1673
    %v1832 = vunpack.c.h.b16 %v1673
    %v1833 = vunpack.c.l.b16 %v1674
    %v1834 = vunpack.c.h.b16 %v1674
    %v1835 = vunpack.c.l.b16 %v1675
    %v1836 = vunpack.c.h.b16 %v1675
    %v1837 = vunpack.c.l.b16 %v1676
    %v1838 = vunpack.c.h.b16 %v1676
    %v1839 = vunpack.c.l.b16 %v1677
    %v1840 = vunpack.c.h.b16 %v1677
    %v1841 = vunpack.c.l.b16 %v1678
    %v1842 = vunpack.c.h.b16 %v1678
    %v1843 = vunpack.c.l.b16 %v1679
    %v1844 = vunpack.c.h.b16 %v1679
    %v1845 = vunpack.c.l.b16 %v1680
    %v1846 = vunpack.c.h.b16 %v1680
    %v1847 = vunpack.c.l.b16 %v1681
    %v1848 = vunpack.c.h.b16 %v1681
    %v1849 = vunpack.c.l.b16 %v1682
    %v1850 = vunpack.c.h.b16 %v1682
    %v1851 = vunpack.c.l.b16 %v1683
    %v1852 = vunpack.c.h.b16 %v1683
    %v1853 = vunpack.c.l.b16 %v1684
    %v1854 = vunpack.c.h.b16 %v1684
    %v1855 = vunpack.c.l.b16 %v1685
    %v1856 = vunpack.c.h.b16 %v1685
    %v1857 = vunpack.c.l.b16 %v1686
    %v1858 = vunpack.c.h.b16 %v1686
    %v1859 = vunpack.c.l.b16 %v1687
    %v1860 = vunpack.c.h.b16 %v1687
    %v1861 = vunpack.c.l.b16 %v1688
    %v1862 = vunpack.c.h.b16 %v1688
    %v1863 = vunpack.c.l.b16 %v1689
    %v1864 = vunpack.c.h.b16 %v1689
    %v1865 = vunpack.c.l.b16 %v1690
    %v1866 = vunpack.c.h.b16 %v1690
    %v1867 = vunpack.c.l.b16 %v1691
    %v1868 = vunpack.c.h.b16 %v1691
    %v1869 = vunpack.c.l.b16 %v1692
    %v1870 = vunpack.c.h.b16 %v1692
    %v1871 = vunpack.c.l.b16 %v1693
    %v1872 = vunpack.c.h.b16 %v1693
    %v1873 = vunpack.c.l.b16 %v1694
    %v1874 = vunpack.c.h.b16 %v1694
    %v1875 = vunpack.c.l.b16 %v1695
    %v1876 = vunpack.c.h.b16 %v1695
    %v1877 = vunpack.c.l.b16 %v1696
    %v1878 = vunpack.c.h.b16 %v1696
    %v1879 = vunpack.c.l.b16 %v1697
    %v1880 = vunpack.c.h.b16 %v1697
    %v1881 = vunpack.c.l.b16 %v1698
    %v1882 = vunpack.c.h.b16 %v1698
    %v1883 = vunpack.c.l.b16 %v1699
    %v1884 = vunpack.c.h.b16 %v1699
    %v1885 = vunpack.c.l.b16 %v1700
    %v1886 = vunpack.c.h.b16 %v1700
    %v1887 = vunpack.c.l.b16 %v1701
    %v1888 = vunpack.c.h.b16 %v1701
    %v1889 = vunpack.c.l.b16 %v1702
    %v1890 = vunpack.c.h.b16 %v1702
    %v1891 = vunpack.c.l.b16 %v1703
    %v1892 = vunpack.c.h.b16 %v1703
    %v1893 = vunpack.c.l.b16 %v1704
    %v1894 = vunpack.c.h.b16 %v1704
    %v1895 = vunpack.c.l.b16 %v1705
    %v1896 = vunpack.c.h.b16 %v1705
    %v1897 = vunpack.c.l.b16 %v1706
    %v1898 = vunpack.c.h.b16 %v1706
    %v1899 = vunpack.c.l.b16 %v1707
    %v1900 = vunpack.c.h.b16 %v1707
    %v1901 = vunpack.c.l.b16 %v1708
    %v1902 = vunpack.c.h.b16 %v1708
    %v1903 = vunpack.c.l.b16 %v1709
    %v1904 = vunpack.c.h.b16 %v1709
    %v1905 = vunpack.c.l.b16 %v1710
    %v1906 = vunpack.c.h.b16 %v1710
    %v1907 = vunpack.c.l.b16 %v1711
    %v1908 = vunpack.c.h.b16 %v1711
    %v1909 = vunpack.c.l.b16 %v1712
    %v1910 = vunpack.c.h.b16 %v1712
    %v1911 = vunpack.c.l.b16 %v1713
    %v1912 = vunpack.c.h.b16 %v1713
    %v1913 = vunpack.c.l.b16 %v1714
    %v1914 = vunpack.c.h.b16 %v1714
    %v1915 = vunpack.c.l.b16 %v1715
    %v1916 = vunpack.c.h.b16 %v1715
    %v1917 = vunpack.c.l.b16 %v1716
    %v1918 = vunpack.c.h.b16 %v1716
    %v1919 = vunpack.c.l.b16 %v1717
    %v1920 = vunpack.c.h.b16 %v1717
    %v1921 = vunpack.c.l.b16 %v1718
    %v1922 = vunpack.c.h.b16 %v1718
    %v1923 = vpack.c.b16 %v1797, %v1795
    %v1924 = vpack.c.b16 %v1798, %v1796
    %v1925 = vpack.c.b16 %v1801, %v1799
    %v1926 = vpack.c.b16 %v1802, %v1800
    %v1927 = vpack.c.b16 %v1805, %v1803
    %v1928 = vpack.c.b16 %v1806, %v1804
    %v1929 = vpack.c.b16 %v1809, %v1807
    %v1930 = vpack.c.b16 %v1810, %v1808
    %v1931 = vpack.c.b16 %v1813, %v1811
    %v1932 = vpack.c.b16 %v1814, %v1812
    %v1933 = vpack.c.b16 %v1817, %v1815
    %v1934 = vpack.c.b16 %v1818, %v1816
    %v1935 = vpack.c.b16 %v1821, %v1819
    %v1936 = vpack.c.b16 %v1822, %v1820
    %v1937 = vpack.c.b16 %v1825, %v1823
    %v1938 = vpack.c.b16 %v1826, %v1824
    %v1939 = vpack.c.b16 %v1829, %v1827
    %v1940 = vpack.c.b16 %v1830, %v1828
    %v1941 = vpack.c.b16 %v1833, %v1831
    %v1942 = vpack.c.b16 %v1834, %v1832
    %v1943 = vpack.c.b16 %v1837, %v1835
    %v1944 = vpack.c.b16 %v1838, %v1836
    %v1945 = vpack.c.b16 %v1841, %v1839
    %v1946 = vpack.c.b16 %v1842, %v1840
    %v1947 = vpack.c.b16 %v1845, %v1843
    %v1948 = vpack.c.b16 %v1846, %v1844
    %v1949 = vpack.c.b16 %v1849, %v1847
    %v1950 = vpack.c.b16 %v1850, %v1848
    %v1951 = vpack.c.b16 %v1853, %v1851
    %v1952 = vpack.c.b16 %v1854, %v1852
    %v1953 = vpack.c.b16 %v1857, %v1855
    %v1954 = vpack.c.b16 %v1858, %v1856
    %v1955 = vpack.c.b16 %v1861, %v1859
    %v1956 = vpack.c.b16 %v1862, %v1860
    %v1957 = vpack.c.b16 %v1865, %v1863
    %v1958 = vpack.c.b16 %v1866, %v1864
    %v1959 = vpack.c.b16 %v1869, %v1867
    %v1960 = vpack.c.b16 %v1870, %v1868
    %v1961 = vpack.c.b16 %v1873, %v1871
    %v1962 = vpack.c.b16 %v1874, %v1872
    %v1963 = vpack.c.b16 %v1877, %v1875
    %v1964 = vpack.c.b16 %v1878, %v1876
    %v1965 = vpack.c.b16 %v1881, %v1879
    %v1966 = vpack.c.b16 %v1882, %v1880
    %v1967 = vpack.c.b16 %v1885, %v1883
    %v1968 = vpack.c.b16 %v1886, %v1884
    %v1969 = vpack.c.b16 %v1889, %v1887
    %v1970 = vpack.c.b16 %v1890, %v1888
    %v1971 = vpack.c.b16 %v1893, %v1891
    %v1972 = vpack.c.b16 %v1894, %v1892
    %v1973 = vpack.c.b16 %v1897, %v1895
    %v1974 = vpack.c.b16 %v1898, %v1896
    %v1975 = vpack.c.b16 %v1901, %v1899
    %v1976 = vpack.c.b16 %v1902, %v1900
    %v1977 = vpack.c.b16 %v1905, %v1903
    %v1978 = vpack.c.b16 %v1906, %v1904
    %v1979 = vpack.c.b16 %v1909, %v1907
    %v1980 = vpack.c.b16 %v1910, %v1908
    %v1981 = vpack.c.b16 %v1913, %v1911
    %v1982 = vpack.c.b16 %v1914, %v1912
    %v1983 = vpack.c.b16 %v1917, %v1915
    %v1984 = vpack.c.b16 %v1918, %v1916
    %v1985 = vpack.c.b16 %v1921, %v1919
    %v1986 = vpack.c.b16 %v1922, %v1920
    %2051 = vmatprep.subr.bf16.mxu0 %v1924
    %2052 = vmatpush1.bf16.msra.mxu0 %v1923
    %2053 = vmatprep.subr.bf16.mxu0 %v1926
    %2054 = vmatpush1.bf16.msra.mxu0 %v1925
    %2055 = vmatprep.subr.bf16.mxu0 %v1928
    %2056 = vmatpush1.bf16.msra.mxu0 %v1927
    %2057 = vmatprep.subr.bf16.mxu0 %v1930
    %2058 = vmatpush1.bf16.msra.mxu0 %v1929
    %2059 = vmatprep.subr.bf16.mxu0 %v1932
    %2060 = vmatpush1.bf16.msra.mxu0 %v1931
    %2061 = vmatprep.subr.bf16.mxu0 %v1934
    %2062 = vmatpush1.bf16.msra.mxu0 %v1933
    %2063 = vmatprep.subr.bf16.mxu0 %v1936
    %2064 = vmatpush1.bf16.msra.mxu0 %v1935
    %2065 = vmatprep.subr.bf16.mxu0 %v1938
    %2066 = vmatpush1.bf16.msra.mxu0 %v1937
    %2067 = vmatprep.subr.bf16.mxu0 %v1940
    %2068 = vmatpush1.bf16.msra.mxu0 %v1939
    %2069 = vmatprep.subr.bf16.mxu0 %v1942
    %2070 = vmatpush1.bf16.msra.mxu0 %v1941
    %2071 = vmatprep.subr.bf16.mxu0 %v1944
    %2072 = vmatpush1.bf16.msra.mxu0 %v1943
    %2073 = vmatprep.subr.bf16.mxu0 %v1946
    %2074 = vmatpush1.bf16.msra.mxu0 %v1945
    %2075 = vmatprep.subr.bf16.mxu0 %v1948
    %2076 = vmatpush1.bf16.msra.mxu0 %v1947
    %2077 = vmatprep.subr.bf16.mxu0 %v1950
    %2078 = vmatpush1.bf16.msra.mxu0 %v1949
    %2079 = vmatprep.subr.bf16.mxu0 %v1952
    %2080 = vmatpush1.bf16.msra.mxu0 %v1951
    %2081 = vmatprep.subr.bf16.mxu0 %v1954
    %2082 = vmatpush1.bf16.msra.mxu0 %v1953
    %2083 = vmatprep.mubr.bf16.mxu0 %v1652
    %2084 = vmatmul.mubr.bf16.gmra.mrb[0].mxu0 %v1651
    %v2085 = vpop.f32.mrb[0].mxu0
    %v2086 = vadd.f32 %v1724, %v2085
    %v2087 = vpop.f32.mrb[0].mxu0
    %v2088 = vadd.f32 %v1728, %v2087
    %v2089 = vpop.f32.mrb[0].mxu0
    %v2090 = vpop.f32.mrb[0].mxu0
    %2091 = vdwg.mxu0
    %2092 = vmatprep.subr.bf16.mxu0 %v1956
    %2093 = vmatpush1.bf16.msra.mxu0 %v1955
    %2094 = vmatprep.subr.bf16.mxu0 %v1958
    %2095 = vmatpush1.bf16.msra.mxu0 %v1957
    %2096 = vmatprep.subr.bf16.mxu0 %v1960
    %2097 = vmatpush1.bf16.msra.mxu0 %v1959
    %2098 = vmatprep.subr.bf16.mxu0 %v1962
    %2099 = vmatpush1.bf16.msra.mxu0 %v1961
    %2100 = vmatprep.subr.bf16.mxu0 %v1964
    %2101 = vmatpush1.bf16.msra.mxu0 %v1963
    %2102 = vmatprep.subr.bf16.mxu0 %v1966
    %2103 = vmatpush1.bf16.msra.mxu0 %v1965
    %2104 = vmatprep.subr.bf16.mxu0 %v1968
    %2105 = vmatpush1.bf16.msra.mxu0 %v1967
    %2106 = vmatprep.subr.bf16.mxu0 %v1970
    %2107 = vmatpush1.bf16.msra.mxu0 %v1969
    %2108 = vmatprep.subr.bf16.mxu0 %v1972
    %2109 = vmatpush1.bf16.msra.mxu0 %v1971
    %2110 = vmatprep.subr.bf16.mxu0 %v1974
    %2111 = vmatpush1.bf16.msra.mxu0 %v1973
    %2112 = vmatprep.subr.bf16.mxu0 %v1976
    %2113 = vmatpush1.bf16.msra.mxu0 %v1975
    %2114 = vmatprep.subr.bf16.mxu0 %v1978
    %2115 = vmatpush1.bf16.msra.mxu0 %v1977
    %2116 = vmatprep.subr.bf16.mxu0 %v1980
    %2117 = vmatpush1.bf16.msra.mxu0 %v1979
    %2118 = vmatprep.subr.bf16.mxu0 %v1982
    %2119 = vmatpush1.bf16.msra.mxu0 %v1981
    %2120 = vmatprep.subr.bf16.mxu0 %v1984
    %2121 = vmatpush1.bf16.msra.mxu0 %v1983
    %2122 = vmatprep.subr.bf16.mxu0 %v1986
    %2123 = vmatpush1.bf16.msra.mxu0 %v1985
    %2124 = vmatprep.mubr.bf16.mxu0 %v1654
    %2125 = vmatmul.mubr.bf16.gmra.mrb[0].mxu0 %v1653
    %v2126 = vpop.f32.mrb[0].mxu0
    %v2127 = vadd.f32 %v2086, %v2126
    %v2128 = vpop.f32.mrb[0].mxu0
    %v2129 = vadd.f32 %v2088, %v2128
    %v2130 = vpop.f32.mrb[0].mxu0
    %v2131 = vpop.f32.mrb[0].mxu0
    %2132 = vdwg.mxu0
    %v2133 = vmax.f32 %v2127, 0.0
    %v2134 = vmax.f32 %v2129, 0.0
    %v2135 = vld [vmem:[%s16] sm:$0xff]
    %v2136 = vld [vmem:[%s16 + $0x8] sm:$0xff]
    %v2137 = vld [vmem:[%s16 + $0x10] sm:$0xff]
    %v2138 = vld [vmem:[%s16 + $0x18] sm:$0xff]
    %v2139 = vld [vmem:[%s16 + $0x20] sm:$0xff]
    %v2140 = vld [vmem:[%s16 + $0x28] sm:$0xff]
    %v2141 = vld [vmem:[%s16 + $0x30] sm:$0xff]
    %v2142 = vld [vmem:[%s16 + $0x38] sm:$0xff]
    %v2143 = vld [vmem:[%s16 + $0x40] sm:$0xff]
    %v2144 = vld [vmem:[%s16 + $0x48] sm:$0xff]
    %v2145 = vld [vmem:[%s16 + $0x50] sm:$0xff]
    %v2146 = vld [vmem:[%s16 + $0x58] sm:$0xff]
    %v2147 = vld [vmem:[%s16 + $0x60] sm:$0xff]
    %v2148 = vld [vmem:[%s16 + $0x68] sm:$0xff]
    %v2149 = vld [vmem:[%s16 + $0x70] sm:$0xff]
    %v2150 = vld [vmem:[%s16 + $0x78] sm:$0xff]
    %v2151 = vld [vmem:[%s16 + $0x80] sm:$0xff]
    %v2152 = vld [vmem:[%s16 + $0x88] sm:$0xff]
    %v2153 = vld [vmem:[%s16 + $0x90] sm:$0xff]
    %v2154 = vld [vmem:[%s16 + $0x98] sm:$0xff]
    %v2155 = vld [vmem:[%s16 + $0xa0] sm:$0xff]
    %v2156 = vld [vmem:[%s16 + $0xa8] sm:$0xff]
    %v2157 = vld [vmem:[%s16 + $0xb0] sm:$0xff]
    %v2158 = vld [vmem:[%s16 + $0xb8] sm:$0xff]
    %v2159 = vld [vmem:[%s16 + $0xc0] sm:$0xff]
    %v2160 = vld [vmem:[%s16 + $0xc8] sm:$0xff]
    %v2161 = vld [vmem:[%s16 + $0xd0] sm:$0xff]
    %v2162 = vld [vmem:[%s16 + $0xd8] sm:$0xff]
    %v2163 = vld [vmem:[%s16 + $0xe0] sm:$0xff]
    %v2164 = vld [vmem:[%s16 + $0xe8] sm:$0xff]
    %v2165 = vld [vmem:[%s16 + $0xf0] sm:$0xff]
    %v2166 = vld [vmem:[%s16 + $0xf8] sm:$0xff]
    %v2167 = vld [vmem:[%s17] sm:$0x1]
    %v2169 = vlaneseq
    %v2170 = vshrl.u32 %v2169, 7
    %v2171 = vsub.s32 0, %v2170
    %v2172 = vrot.slane %v2167, %v2171
    %2174 = vmatprep.subr.mxu0 0.0
    %2175 = vmatpush1.msra.mxu0 %v2135
    %2176 = vmatprep.subr.mxu0 0.0
    %2177 = vmatpush1.msra.mxu0 %v2136
    %2178 = vmatprep.subr.mxu0 0.0
    %2179 = vmatpush1.msra.mxu0 %v2137
    %2180 = vmatprep.subr.mxu0 0.0
    %2181 = vmatpush1.msra.mxu0 %v2138
    %2182 = vmatprep.subr.mxu0 0.0
    %2183 = vmatpush1.msra.mxu0 %v2139
    %2184 = vmatprep.subr.mxu0 0.0
    %2185 = vmatpush1.msra.mxu0 %v2140
    %2186 = vmatprep.subr.mxu0 0.0
    %2187 = vmatpush1.msra.mxu0 %v2141
    %2188 = vmatprep.subr.mxu0 0.0
    %2189 = vmatpush1.msra.mxu0 %v2142
    %2190 = vmatprep.subr.mxu0 0.0
    %2191 = vmatpush1.msra.mxu0 %v2143
    %2192 = vmatprep.subr.mxu0 0.0
    %2193 = vmatpush1.msra.mxu0 %v2144
    %2194 = vmatprep.subr.mxu0 0.0
    %2195 = vmatpush1.msra.mxu0 %v2145
    %2196 = vmatprep.subr.mxu0 0.0
    %2197 = vmatpush1.msra.mxu0 %v2146
    %2198 = vmatprep.subr.mxu0 0.0
    %2199 = vmatpush1.msra.mxu0 %v2147
    %2200 = vmatprep.subr.mxu0 0.0
    %2201 = vmatpush1.msra.mxu0 %v2148
    %2202 = vmatprep.subr.mxu0 0.0
    %2203 = vmatpush1.msra.mxu0 %v2149
    %2204 = vmatprep.subr.mxu0 0.0
    %2205 = vmatpush1.msra.mxu0 %v2150
    %2206 = vmatprep.subr.mxu0 0.0
    %2207 = vmatpush1.msra.mxu0 %v2151
    %2208 = vmatprep.subr.mxu0 0.0
    %2209 = vmatpush1.msra.mxu0 %v2152
    %2210 = vmatprep.subr.mxu0 0.0
    %2211 = vmatpush1.msra.mxu0 %v2153
    %2212 = vmatprep.subr.mxu0 0.0
    %2213 = vmatpush1.msra.mxu0 %v2154
    %2214 = vmatprep.subr.mxu0 0.0
    %2215 = vmatpush1.msra.mxu0 %v2155
    %2216 = vmatprep.subr.mxu0 0.0
    %2217 = vmatpush1.msra.mxu0 %v2156
    %2218 = vmatprep.subr.mxu0 0.0
    %2219 = vmatpush1.msra.mxu0 %v2157
    %2220 = vmatprep.subr.mxu0 0.0
    %2221 = vmatpush1.msra.mxu0 %v2158
    %2222 = vmatprep.subr.mxu0 0.0
    %2223 = vmatpush1.msra.mxu0 %v2159
    %2224 = vmatprep.subr.mxu0 0.0
    %2225 = vmatpush1.msra.mxu0 %v2160
    %2226 = vmatprep.subr.mxu0 0.0
    %2227 = vmatpush1.msra.mxu0 %v2161
    %2228 = vmatprep.subr.mxu0 0.0
    %2229 = vmatpush1.msra.mxu0 %v2162
    %2230 = vmatprep.subr.mxu0 0.0
    %2231 = vmatpush1.msra.mxu0 %v2163
    %2232 = vmatprep.subr.mxu0 0.0
    %2233 = vmatpush1.msra.mxu0 %v2164
    %2234 = vmatprep.subr.mxu0 0.0
    %2235 = vmatpush1.msra.mxu0 %v2165
    %2236 = vmatprep.subr.mxu0 0.0
    %2237 = vmatpush1.msra.mxu0 %v2166
    %2238 = vmatprep.mubr.f32.mxu0 %v2134
    %2239 = vmatmul.mubr.f32.gmra.mrb[0].mxu0 %v2133
    %v2240 = vpop.f32.mrb[0].mxu0
    %v2241 = vadd.f32 %v2172, %v2240
    %v2242 = vpop.f32.mrb[0].mxu0
    %2243 = vdwg.mxu0
    %vm2244 = vcmask 9216
    %v2245 = vsel %vm2244, %v2241, -inf
    %2246 = vmax.xlane.f32.xlu0 %v2245
    %v2247 = vpop.xlane.xlu0 %2246
    %v2248 = vsub.f32 %v2241, %v2247
    %v2249 = vmul.f32 %v2248, 1.442695
    %v2250 = vpow.pop %v2249
    %v2251 = vsel %vm2244, %v2250, 0.0
    %2252 = vadd.xlane.f32.xlu0 %v2251
    %v2253 = vpop.xlane.xlu0 %2252
    %v2254 = vrcp.pop %v2253
    %v2255 = vmul.f32 %v2250, %v2254
    %v2256 = vadd.f32 %v1052, %v1649
    %v2257 = vadd.f32 %v1054, %v1650
    %2259 = vset.pattern.permute.xlu0 0
    %2260 = vperm.xlu0 %2259, %v2255
    %v2261 = vpop.permute.xlu0 %2260
    %v2263 = vmul.f32 %v1052, %v2261
    %v2264 = vmul.f32 %v1054, %v2261
    %v2265 = vadd.f32 %v2256, %v2263
    %v2266 = vadd.f32 %v2257, %v2264
    %2267 = vset.pattern.permute.xlu0 1
    %2268 = vperm.xlu0 %2267, %v2255
    %v2269 = vpop.permute.xlu0 %2268
    %v2271 = vmul.f32 %v1649, %v2269
    %v2272 = vmul.f32 %v1650, %v2269
    %v2273 = vadd.f32 %v2265, %v2271
    %v2274 = vadd.f32 %v2266, %v2272
    %v2275 = vpack.c.bf16 %v2273, %v2273
    %v2276 = vpack.c.bf16 %v2274, %v2274
    %v2277 = vld [vmem:[#allocation20] sm:$0xf]
    %v2278 = vld [vmem:[#allocation20 + $0x4] sm:$0xf]
    %v2279 = vld [vmem:[#allocation20 + $0x8] sm:$0xf]
    %v2280 = vld [vmem:[#allocation20 + $0xc] sm:$0xf]
    %v2281 = vld [vmem:[#allocation20 + $0x10] sm:$0xf]
    %v2282 = vld [vmem:[#allocation20 + $0x14] sm:$0xf]
    %v2283 = vld [vmem:[#allocation20 + $0x18] sm:$0xf]
    %v2284 = vld [vmem:[#allocation20 + $0x1c] sm:$0xf]
    %v2285 = vld [vmem:[#allocation20 + $0x20] sm:$0xf]
    %v2286 = vld [vmem:[#allocation20 + $0x24] sm:$0xf]
    %v2287 = vld [vmem:[#allocation20 + $0x28] sm:$0xf]
    %v2288 = vld [vmem:[#allocation20 + $0x2c] sm:$0xf]
    %v2289 = vld [vmem:[#allocation20 + $0x30] sm:$0xf]
    %v2290 = vld [vmem:[#allocation20 + $0x34] sm:$0xf]
    %v2291 = vld [vmem:[#allocation20 + $0x38] sm:$0xf]
    %v2292 = vld [vmem:[#allocation20 + $0x3c] sm:$0xf]
    %v2293 = vld [vmem:[#allocation20 + $0x40] sm:$0xf]
    %v2294 = vld [vmem:[#allocation20 + $0x44] sm:$0xf]
    %v2295 = vld [vmem:[#allocation20 + $0x48] sm:$0xf]
    %v2296 = vld [vmem:[#allocation20 + $0x4c] sm:$0xf]
    %v2297 = vld [vmem:[#allocation20 + $0x50] sm:$0xf]
    %v2298 = vld [vmem:[#allocation20 + $0x54] sm:$0xf]
    %v2299 = vld [vmem:[#allocation20 + $0x58] sm:$0xf]
    %v2300 = vld [vmem:[#allocation20 + $0x5c] sm:$0xf]
    %v2301 = vld [vmem:[#allocation20 + $0x60] sm:$0xf]
    %v2302 = vld [vmem:[#allocation20 + $0x64] sm:$0xf]
    %v2303 = vld [vmem:[#allocation20 + $0x68] sm:$0xf]
    %v2304 = vld [vmem:[#allocation20 + $0x6c] sm:$0xf]
    %v2305 = vld [vmem:[#allocation20 + $0x70] sm:$0xf]
    %v2306 = vld [vmem:[#allocation20 + $0x74] sm:$0xf]
    %v2307 = vld [vmem:[#allocation20 + $0x78] sm:$0xf]
    %v2308 = vld [vmem:[#allocation20 + $0x7c] sm:$0xf]
    %v2309 = vld [vmem:[%s19] sm:$0x1]
    %v2311 = vlaneseq
    %v2312 = vshrl.u32 %v2311, 7
    %v2313 = vsub.s32 0, %v2312
    %v2314 = vrot.slane %v2309, %v2313
    %v2348 = vunpack.c.l.b16 %v2277
    %v2349 = vunpack.c.l.b16 %v2278
    %v2350 = vunpack.c.l.b16 %v2279
    %v2351 = vunpack.c.l.b16 %v2280
    %v2352 = vunpack.c.l.b16 %v2281
    %v2353 = vunpack.c.l.b16 %v2282
    %v2354 = vunpack.c.l.b16 %v2283
    %v2355 = vunpack.c.l.b16 %v2284
    %v2356 = vunpack.c.l.b16 %v2285
    %v2357 = vunpack.c.l.b16 %v2286
    %v2358 = vunpack.c.l.b16 %v2287
    %v2359 = vunpack.c.l.b16 %v2288
    %v2360 = vunpack.c.l.b16 %v2289
    %v2361 = vunpack.c.l.b16 %v2290
    %v2362 = vunpack.c.l.b16 %v2291
    %v2363 = vunpack.c.l.b16 %v2292
    %v2364 = vunpack.c.l.b16 %v2293
    %v2365 = vunpack.c.l.b16 %v2294
    %v2366 = vunpack.c.l.b16 %v2295
    %v2367 = vunpack.c.l.b16 %v2296
    %v2368 = vunpack.c.l.b16 %v2297
    %v2369 = vunpack.c.l.b16 %v2298
    %v2370 = vunpack.c.l.b16 %v2299
    %v2371 = vunpack.c.l.b16 %v2300
    %v2372 = vunpack.c.l.b16 %v2301
    %v2373 = vunpack.c.l.b16 %v2302
    %v2374 = vunpack.c.l.b16 %v2303
    %v2375 = vunpack.c.l.b16 %v2304
    %v2376 = vunpack.c.l.b16 %v2305
    %v2377 = vunpack.c.l.b16 %v2306
    %v2378 = vunpack.c.l.b16 %v2307
    %v2379 = vunpack.c.l.b16 %v2308
    %v2380 = vpack.c.b16 %v2349, %v2348
    %v2381 = vpack.c.b16 %v2351, %v2350
    %v2382 = vpack.c.b16 %v2353, %v2352
    %v2383 = vpack.c.b16 %v2355, %v2354
    %v2384 = vpack.c.b16 %v2357, %v2356
    %v2385 = vpack.c.b16 %v2359, %v2358
    %v2386 = vpack.c.b16 %v2361, %v2360
    %v2387 = vpack.c.b16 %v2363, %v2362
    %v2388 = vpack.c.b16 %v2365, %v2364
    %v2389 = vpack.c.b16 %v2367, %v2366
    %v2390 = vpack.c.b16 %v2369, %v2368
    %v2391 = vpack.c.b16 %v2371, %v2370
    %v2392 = vpack.c.b16 %v2373, %v2372
    %v2393 = vpack.c.b16 %v2375, %v2374
    %v2394 = vpack.c.b16 %v2377, %v2376
    %v2395 = vpack.c.b16 %v2379, %v2378
    %2412 = vmatprep.subr.bf16.mxu0 0
    %2413 = vmatpush1.bf16.msra.mxu0 %v2380
    %2414 = vmatprep.subr.bf16.mxu0 0
    %2415 = vmatpush1.bf16.msra.mxu0 %v2381
    %2416 = vmatprep.subr.bf16.mxu0 0
    %2417 = vmatpush1.bf16.msra.mxu0 %v2382
    %2418 = vmatprep.subr.bf16.mxu0 0
    %2419 = vmatpush1.bf16.msra.mxu0 %v2383
    %2420 = vmatprep.subr.bf16.mxu0 0
    %2421 = vmatpush1.bf16.msra.mxu0 %v2384
    %2422 = vmatprep.subr.bf16.mxu0 0
    %2423 = vmatpush1.bf16.msra.mxu0 %v2385
    %2424 = vmatprep.subr.bf16.mxu0 0
    %2425 = vmatpush1.bf16.msra.mxu0 %v2386
    %2426 = vmatprep.subr.bf16.mxu0 0
    %2427 = vmatpush1.bf16.msra.mxu0 %v2387
    %2428 = vmatprep.subr.bf16.mxu0 0
    %2429 = vmatpush1.bf16.msra.mxu0 %v2388
    %2430 = vmatprep.subr.bf16.mxu0 0
    %2431 = vmatpush1.bf16.msra.mxu0 %v2389
    %2432 = vmatprep.subr.bf16.mxu0 0
    %2433 = vmatpush1.bf16.msra.mxu0 %v2390
    %2434 = vmatprep.subr.bf16.mxu0 0
    %2435 = vmatpush1.bf16.msra.mxu0 %v2391
    %2436 = vmatprep.subr.bf16.mxu0 0
    %2437 = vmatpush1.bf16.msra.mxu0 %v2392
    %2438 = vmatprep.subr.bf16.mxu0 0
    %2439 = vmatpush1.bf16.msra.mxu0 %v2393
    %2440 = vmatprep.subr.bf16.mxu0 0
    %2441 = vmatpush1.bf16.msra.mxu0 %v2394
    %2442 = vmatprep.subr.bf16.mxu0 0
    %2443 = vmatpush1.bf16.msra.mxu0 %v2395
    %2444 = vmatprep.mubr.bf16.mxu0 %v2276
    %2445 = vmatmul.mubr.bf16.gmra.mrb[0].mxu0 %v2275
    %v2446 = vpop.f32.mrb[0].mxu0
    %v2447 = vadd.f32 %v2314, %v2446
    %v2448 = vpop.f32.mrb[0].mxu0
    %v2449 = vpop.f32.mrb[0].mxu0
    %v2450 = vpop.f32.mrb[0].mxu0
    %2451 = vdwg.mxu0
    %2452 = vst [vmem:[#allocation22] sm:$0x3] %v2447
    // Predicated region
    $region151: #{tpu_custom_call.1} parent=1 // pred_check
      _
    $region152: #{tpu_custom_call.1} parent=1 // pred_check_branch
      %2454 = sbr.rel (0) target = $region154
    $region153: #{tpu_custom_call.1} parent=1 // pred_region
      %s2456 = ssub.s32 32, 32
      %2457 = vsyncadd [#allocation7], %s2456
      %s2459 = sshll.u32 [#allocation22], 4
      %s2460 = int_to_ptr.vmem [resolvable:$true] %s2459
      %2462 = dma.vmem_to_hbm [thread:$0]  %s2460, 32, %s20, [#allocation7]
    $region154: #{tpu_custom_call.1} parent=1 // pred_fallthru
      _
    // Predicated region
    $region155: #{tpu_custom_call.1} parent=1 // pred_check
      _
    $region156: #{tpu_custom_call.1} parent=1 // pred_check_branch
      %2464 = sbr.rel (0) target = $region158
    $region157: #{tpu_custom_call.1} parent=1 // pred_region
      %2465 = dma.done [#allocation7], 32
    $region158: #{tpu_custom_call.1} parent=1 // pred_fallthru
      _
    %2466 = vsyncpa [#allocation6], 1
    %2467 = vsyncpa [#allocation9], 1
    %2468 = vsyncpa [#allocation12], 1
    %2469 = vsyncpa [#allocation15], 1
    %2470 = vsyncpa [#allocation18], 1
    %2471 = vsyncpa [#allocation21], 1
    %2472 = vsyncpa [#allocation7], 1
  %2473 = vsyncmov [#allocation4]
  %s2474 = vpop.sfrf %2473
  %p2475 = scmp.eq.s32.totalorder %s2474, 0
  %p2476 = pneg %p2475
  %2478 = shalt.err (%p2476)
  %s2479 = scalar_lea.sflag [#allocation4], 1
  %2480 = vsyncmov %s2479
  %s2481 = vpop.sfrf %2480
  %p2482 = scmp.eq.s32.totalorder %s2481, 0
  %p2483 = pneg %p2482
  %2485 = shalt.err (%p2483)

</llo_original>
